<compile_context>
chip_gen: v7x
topology: tpu7x:2x2x1
jax: 0.10.0
libtpu: 0.0.40
codegen_flags: <defaults>
</compile_context>

<pallas_src>
import jax
import jax.numpy as jnp
from jax.experimental import pallas as pl
from jax.experimental.pallas import tpu as pltpu


_LANE = 128
_MAX_TB = 512                      # batch tile cap (sweepable: 512/1024)
_VMEM_BUDGET = 24 * 1024 * 1024    # tensor budget; leaves headroom under the 32 MiB scoped limit
_ACT_BYTES_PER_ROW = 12 * 1024     # f32/bf16 activation temporaries per batch row in-kernel


def _round_up(x, m):
    return ((x + m - 1) // m) * m


def _leaky_relu(x, slope=0.2):
    return jnp.where(x >= 0, x, slope * x)


def discriminator_kernel(x_ref,
                         w1_ref, b1_ref,
                         w2_ref, b2_ref,
                         w3_ref, b3_ref,
                         w4_ref, b4_ref,
                         o_ref):
    """One batch tile: three MXU layers + VPU/XLU final layer + sigmoid."""
    x = x_ref[...]
    if x.dtype != jnp.bfloat16:      # accept bf16 producers directly; cast only if fed f32
        x = x.astype(jnp.bfloat16)

    # Layer 1: k_pad -> 1024 (MXU, bf16 x bf16 -> f32 accumulation)
    h = jnp.dot(x, w1_ref[...], preferred_element_type=jnp.float32) + b1_ref[...]
    h = _leaky_relu(h).astype(jnp.bfloat16)
    # Dropout(0.3) == identity in eval mode.

    # Layer 2: 1024 -> 512
    h = jnp.dot(h, w2_ref[...], preferred_element_type=jnp.float32) + b2_ref[...]
    h = _leaky_relu(h).astype(jnp.bfloat16)

    # Layer 3: 512 -> 256
    h = jnp.dot(h, w3_ref[...], preferred_element_type=jnp.float32) + b3_ref[...]
    h = _leaky_relu(h)               # stays f32 for the final VPU/XLU layer

    # Layer 4: 256 -> 1 on the VPU/XLU (broadcast-mul + lane reduce) instead of a
    # 99%-padding MXU pass; yields the slim (tb, 1) column we actually store.
    logits = jnp.sum(h * w4_ref[...], axis=-1, keepdims=True) + b4_ref[...]
    o_ref[...] = jax.nn.sigmoid(logits).astype(o_ref.dtype)


def _choose_tile(batch, k_pad, x_itemsize, weight_bytes):
    """Pick the batch tile: big (<=512) for MXU duty cycle, >=2 tiles for v7x
    megacore when possible, shrunk if the VMEM footprint would blow the budget."""
    b8 = _round_up(batch, 8)
    n_tiles = (b8 + _MAX_TB - 1) // _MAX_TB
    if n_tiles == 1 and b8 >= 16:
        n_tiles = 2                  # give v7x's 2nd TensorCore work; ~free on v5e/v6e
    tb = _round_up((b8 + n_tiles - 1) // n_tiles, 8)
    # VMEM guard (v7x has only 64 MiB physical / 32 MiB default scoped):
    # double-buffered x tile + activation temporaries + single-buffered weights.
    # Note: an input_dim so large that the weights alone exceed the budget would
    # need a K-tiled layer 1 (out of scope here).
    while tb > 8 and weight_bytes + tb * (2 * k_pad * x_itemsize + _ACT_BYTES_PER_ROW) > _VMEM_BUDGET:
        tb = _round_up(tb // 2, 8)
    return tb


def discriminator_forward(x, params, *, tb=None):
    """x: (B, input_dim) float32 or bfloat16. Returns (B, 1) float32 probabilities."""
    B, input_dim = x.shape
    w1, b1 = params["w1"], params["b1"]
    w2, b2 = params["w2"], params["b2"]
    w3, b3 = params["w3"], params["b3"]
    w4, b4 = params["w4"], params["b4"]
    k_pad = w1.shape[0]              # layer-1 K already padded to a multiple of 128 at init
    assert k_pad >= input_dim

    weight_bytes = sum(int(p.size) * p.dtype.itemsize
                       for p in (w1, b1, w2, b2, w3, b3, w4, b4))
    if tb is None:
        tb = _choose_tile(B, k_pad, x.dtype.itemsize, weight_bytes)
    n_tiles = (B + tb - 1) // tb
    b_pad = n_tiles * tb

    # Batch tail pad and K pad (zero columns) in one pass.
    if b_pad != B or k_pad != input_dim:
        x = jnp.pad(x, ((0, b_pad - B), (0, k_pad - input_dim)))

    # Weights/biases: whole arrays resident in VMEM, DMA'd once (constant block
    # index) and SINGLE-buffered -- a second pipeline buffer is pure VMEM waste
    # for blocks that are never revisited.
    def resident(a):
        return pl.BlockSpec(a.shape, lambda *_: (0,) * a.ndim,
                            pipeline_mode=pl.Buffered(1))

    flops = 2 * b_pad * (k_pad * 1024 + 1024 * 512 + 512 * 256 + 256 * 1)
    bytes_accessed = (b_pad * k_pad * x.dtype.itemsize   # x stream (dominant)
                      + weight_bytes                     # weights fetched once
                      + b_pad * 4)                       # slim (B, 1) f32 output

    out = pl.pallas_call(
        discriminator_kernel,
        out_shape=jax.ShapeDtypeStruct((b_pad, 1), jnp.float32),
        grid=(n_tiles,),
        in_specs=[pl.BlockSpec((tb, k_pad), lambda i: (i, 0)),
                  resident(w1), resident(b1),
                  resident(w2), resident(b2),
                  resident(w3), resident(b3),
                  resident(w4), resident(b4)],
        out_specs=pl.BlockSpec((tb, 1), lambda i: (i, 0)),
        compiler_params=pltpu.CompilerParams(
            dimension_semantics=("parallel",),
            vmem_limit_bytes=32 * 1024 * 1024),
        cost_estimate=pl.CostEstimate(flops=flops,
                                      transcendentals=b_pad,
                                      bytes_accessed=bytes_accessed),
    )(x, w1, b1, w2, b2, w3, b3, w4, b4)

    return out[:B]


def init_params(key, input_dim):
    """PyTorch nn.Linear-style init (U(-k, k), k = 1/sqrt(fan_in)).

    * MXU-layer weights stored pre-transposed as (in_features, out_features)
      bf16 (half the HBM/VMEM bytes, 2x MXU rate); biases stay f32.
    * Layer-1 K dim zero-padded to a multiple of 128 (no ragged MXU K chunk).
    * Final 256->1 layer kept f32 as a (1, 256) row (evaluated on VPU/XLU).
    """
    k_pad = _round_up(input_dim, _LANE)

    def linear(k, fan_in, fan_out):
        kw, kb = jax.random.split(k)
        bound = 1.0 / (float(fan_in) ** 0.5)
        w = jax.random.uniform(kw, (fan_in, fan_out), jnp.float32, -bound, bound)
        b = jax.random.uniform(kb, (1, fan_out), jnp.float32, -bound, bound)
        return w, b

    _, k1, k2, k3, k4 = jax.random.split(key, 5)
    w1, b1 = linear(k1, input_dim, 1024)
    w1 = jnp.pad(w1, ((0, k_pad - input_dim), (0, 0)))   # zero K-pad rows
    w2, b2 = linear(k2, 1024, 512)
    w3, b3 = linear(k3, 512, 256)
    w4, b4 = linear(k4, 256, 1)

    return {
        "w1": w1.astype(jnp.bfloat16), "b1": b1,
        "w2": w2.astype(jnp.bfloat16), "b2": b2,
        "w3": w3.astype(jnp.bfloat16), "b3": b3,
        "w4": w4.T, "b4": b4,                            # (1,256) f32 row, (1,1) f32
    }


def reference_forward(x, params):
    """Pure-JAX reference mirroring the kernel's bf16-in / f32-accum math."""
    input_dim = x.shape[1]
    h = x.astype(jnp.bfloat16)
    h = jnp.dot(h, params["w1"][:input_dim],
                preferred_element_type=jnp.float32) + params["b1"]
    h = _leaky_relu(h).astype(jnp.bfloat16)
    h = jnp.dot(h, params["w2"], preferred_element_type=jnp.float32) + params["b2"]
    h = _leaky_relu(h).astype(jnp.bfloat16)
    h = jnp.dot(h, params["w3"], preferred_element_type=jnp.float32) + params["b3"]
    h = _leaky_relu(h)
    logits = jnp.sum(h * params["w4"], axis=-1, keepdims=True) + params["b4"]
    return jax.nn.sigmoid(logits)


if __name__ == "__main__":
    key = jax.random.PRNGKey(0)
    B, input_dim = 8, 64

    kx, kp, kx2 = jax.random.split(key, 3)
    params = init_params(kp, input_dim)

    # Small single-tile case (input_dim=64 is zero-padded to K=128 internally).
    x = jax.random.normal(kx, (B, input_dim), jnp.float32)
    out = jax.block_until_ready(discriminator_forward(x, params))
    ref = reference_forward(x, params)
    assert out.shape == (B, 1)
    assert jnp.allclose(out, ref, atol=2e-3, rtol=2e-3), "single-tile mismatch"

    # Multi-tile case with batch tail padding (exercises the batch grid).
    B2 = 20
    x2 = jax.random.normal(kx2, (B2, input_dim), jnp.float32)
    out2 = jax.block_until_ready(discriminator_forward(x2, params, tb=8))
    ref2 = reference_forward(x2, params)
    assert out2.shape == (B2, 1)
    assert jnp.allclose(out2, ref2, atol=2e-3, rtol=2e-3), "multi-tile mismatch"

    # bf16 producer path: kernel consumes bf16 x directly (no wrapper cast pass).
    x3 = x.astype(jnp.bfloat16)
    out3 = jax.block_until_ready(discriminator_forward(x3, params))
    ref3 = reference_forward(x3, params)
    assert jnp.allclose(out3, ref3, atol=2e-3, rtol=2e-3), "bf16-input mismatch"

    print("KERNEL_OK")
</pallas_src>

<mosaic_0001>
module attributes {stable_mosaic.version = 11 : i64} {
  func.func @discriminator_kernel(%arg0: i32, %arg1: memref<8x128xf32, #tpu.memory_space<vmem>>, %arg2: memref<128x1024xbf16, #tpu.memory_space<vmem>>, %arg3: memref<1x1024xf32, #tpu.memory_space<vmem>>, %arg4: memref<1024x512xbf16, #tpu.memory_space<vmem>>, %arg5: memref<1x512xf32, #tpu.memory_space<vmem>>, %arg6: memref<512x256xbf16, #tpu.memory_space<vmem>>, %arg7: memref<1x256xf32, #tpu.memory_space<vmem>>, %arg8: memref<1x256xf32, #tpu.memory_space<vmem>>, %arg9: memref<1x1xf32, #tpu.memory_space<vmem>>, %arg10: memref<8x1xf32, #tpu.memory_space<vmem>>) attributes {dimension_semantics = [#tpu.dimension_semantics<parallel>], iteration_bounds = array<i64: 1>, scalar_prefetch = 0 : i64, scratch_operands = 0 : i64, tpu.core_type = #tpu.core_type<tc>, window_params = [{transform_indices = @transform_0, window_bounds = array<i64: 8, 128>}, {pipeline_mode = #tpu.pipeline_mode<synchronous>, transform_indices = @transform_1, window_bounds = array<i64: 128, 1024>}, {pipeline_mode = #tpu.pipeline_mode<synchronous>, transform_indices = @transform_2, window_bounds = array<i64: 1, 1024>}, {pipeline_mode = #tpu.pipeline_mode<synchronous>, transform_indices = @transform_3, window_bounds = array<i64: 1024, 512>}, {pipeline_mode = #tpu.pipeline_mode<synchronous>, transform_indices = @transform_4, window_bounds = array<i64: 1, 512>}, {pipeline_mode = #tpu.pipeline_mode<synchronous>, transform_indices = @transform_5, window_bounds = array<i64: 512, 256>}, {pipeline_mode = #tpu.pipeline_mode<synchronous>, transform_indices = @transform_6, window_bounds = array<i64: 1, 256>}, {pipeline_mode = #tpu.pipeline_mode<synchronous>, transform_indices = @transform_7, window_bounds = array<i64: 1, 256>}, {pipeline_mode = #tpu.pipeline_mode<synchronous>, transform_indices = @transform_8, window_bounds = array<i64: 1, 1>}, {transform_indices = @transform_9, window_bounds = array<i64: 8, 1>}]} {
    %c0 = arith.constant 0 : index
    %c0_0 = arith.constant 0 : index
    %0 = vector.load %arg1[%c0, %c0_0] : memref<8x128xf32, #tpu.memory_space<vmem>>, vector<8x128xf32>
    %1 = arith.truncf %0 : vector<8x128xf32> to vector<8x128xbf16>
    %c0_1 = arith.constant 0 : index
    %c0_2 = arith.constant 0 : index
    %2 = vector.load %arg2[%c0_1, %c0_2] : memref<128x1024xbf16, #tpu.memory_space<vmem>>, vector<128x1024xbf16>
    %cst = arith.constant dense<0.000000e+00> : vector<8x1024xf32>
    %3 = tpu.matmul %1, %2, %cst {dimension_numbers = #tpu.dot_dimension_numbers<[1], [0], [0], [1], [0, 0, 1, 1], [], []>} : vector<8x128xbf16>, vector<128x1024xbf16>, vector<8x1024xf32> -> vector<8x1024xf32>
    %c0_3 = arith.constant 0 : index
    %c0_4 = arith.constant 0 : index
    %4 = vector.load %arg3[%c0_3, %c0_4] : memref<1x1024xf32, #tpu.memory_space<vmem>>, vector<1x1024xf32>
    %5 = vector.broadcast %4 : vector<1x1024xf32> to vector<8x1024xf32>
    %6 = arith.addf %3, %5 : vector<8x1024xf32>
    %cst_5 = arith.constant 0.000000e+00 : f32
    %7 = vector.broadcast %cst_5 : f32 to vector<8x1024xf32>
    %8 = arith.cmpf oge, %6, %7 : vector<8x1024xf32>
    %cst_6 = arith.constant 2.000000e-01 : f32
    %9 = vector.broadcast %cst_6 : f32 to vector<8x1024xf32>
    %10 = arith.mulf %9, %6 : vector<8x1024xf32>
    %11 = arith.select %8, %6, %10 : vector<8x1024xi1>, vector<8x1024xf32>
    %12 = arith.truncf %11 : vector<8x1024xf32> to vector<8x1024xbf16>
    %c0_7 = arith.constant 0 : index
    %c0_8 = arith.constant 0 : index
    %13 = vector.load %arg4[%c0_7, %c0_8] : memref<1024x512xbf16, #tpu.memory_space<vmem>>, vector<1024x512xbf16>
    %cst_9 = arith.constant dense<0.000000e+00> : vector<8x512xf32>
    %14 = tpu.matmul %12, %13, %cst_9 {dimension_numbers = #tpu.dot_dimension_numbers<[1], [0], [0], [1], [0, 0, 1, 1], [], []>} : vector<8x1024xbf16>, vector<1024x512xbf16>, vector<8x512xf32> -> vector<8x512xf32>
    %c0_10 = arith.constant 0 : index
    %c0_11 = arith.constant 0 : index
    %15 = vector.load %arg5[%c0_10, %c0_11] : memref<1x512xf32, #tpu.memory_space<vmem>>, vector<1x512xf32>
    %16 = vector.broadcast %15 : vector<1x512xf32> to vector<8x512xf32>
    %17 = arith.addf %14, %16 : vector<8x512xf32>
    %cst_12 = arith.constant 0.000000e+00 : f32
    %18 = vector.broadcast %cst_12 : f32 to vector<8x512xf32>
    %19 = arith.cmpf oge, %17, %18 : vector<8x512xf32>
    %cst_13 = arith.constant 2.000000e-01 : f32
    %20 = vector.broadcast %cst_13 : f32 to vector<8x512xf32>
    %21 = arith.mulf %20, %17 : vector<8x512xf32>
    %22 = arith.select %19, %17, %21 : vector<8x512xi1>, vector<8x512xf32>
    %23 = arith.truncf %22 : vector<8x512xf32> to vector<8x512xbf16>
    %c0_14 = arith.constant 0 : index
    %c0_15 = arith.constant 0 : index
    %24 = vector.load %arg6[%c0_14, %c0_15] : memref<512x256xbf16, #tpu.memory_space<vmem>>, vector<512x256xbf16>
    %cst_16 = arith.constant dense<0.000000e+00> : vector<8x256xf32>
    %25 = tpu.matmul %23, %24, %cst_16 {dimension_numbers = #tpu.dot_dimension_numbers<[1], [0], [0], [1], [0, 0, 1, 1], [], []>} : vector<8x512xbf16>, vector<512x256xbf16>, vector<8x256xf32> -> vector<8x256xf32>
    %c0_17 = arith.constant 0 : index
    %c0_18 = arith.constant 0 : index
    %26 = vector.load %arg7[%c0_17, %c0_18] : memref<1x256xf32, #tpu.memory_space<vmem>>, vector<1x256xf32>
    %27 = vector.broadcast %26 : vector<1x256xf32> to vector<8x256xf32>
    %28 = arith.addf %25, %27 : vector<8x256xf32>
    %cst_19 = arith.constant 0.000000e+00 : f32
    %29 = vector.broadcast %cst_19 : f32 to vector<8x256xf32>
    %30 = arith.cmpf oge, %28, %29 : vector<8x256xf32>
    %cst_20 = arith.constant 2.000000e-01 : f32
    %31 = vector.broadcast %cst_20 : f32 to vector<8x256xf32>
    %32 = arith.mulf %31, %28 : vector<8x256xf32>
    %33 = arith.select %30, %28, %32 : vector<8x256xi1>, vector<8x256xf32>
    %c0_21 = arith.constant 0 : index
    %c0_22 = arith.constant 0 : index
    %34 = vector.load %arg8[%c0_21, %c0_22] : memref<1x256xf32, #tpu.memory_space<vmem>>, vector<1x256xf32>
    %35 = vector.broadcast %34 : vector<1x256xf32> to vector<8x256xf32>
    %36 = arith.mulf %33, %35 : vector<8x256xf32>
    %cst_23 = arith.constant dense<0.000000e+00> : vector<8xf32>
    %37 = vector.multi_reduction <add>, %36, %cst_23 [1] : vector<8x256xf32> to vector<8xf32>
    %38 = vector.shape_cast %37 : vector<8xf32> to vector<8x1xf32>
    %c0_24 = arith.constant 0 : index
    %c0_25 = arith.constant 0 : index
    %39 = vector.load %arg9[%c0_24, %c0_25] : memref<1x1xf32, #tpu.memory_space<vmem>>, vector<1x1xf32>
    %40 = vector.broadcast %39 : vector<1x1xf32> to vector<8x1xf32>
    %41 = arith.addf %38, %40 : vector<8x1xf32>
    %42 = arith.negf %41 : vector<8x1xf32>
    %43 = math.exp %42 : vector<8x1xf32>
    %cst_26 = arith.constant 1.000000e+00 : f32
    %44 = vector.broadcast %cst_26 : f32 to vector<8x1xf32>
    %45 = arith.addf %44, %43 : vector<8x1xf32>
    %46 = arith.divf %44, %45 : vector<8x1xf32>
    %c0_27 = arith.constant 0 : index
    %c0_28 = arith.constant 0 : index
    %47 = vector.load %arg10[%c0_27, %c0_28] : memref<8x1xf32, #tpu.memory_space<vmem>>, vector<8x1xf32>
    tpu.vector_store %arg10[%c0_27, %c0_28], %46 {strides = array<i32>} : memref<8x1xf32, #tpu.memory_space<vmem>>, vector<8x1xf32>,
    return
  }
  func.func @transform_0(%arg0: i32) -> (i32, i32) {
    %c0_i32 = arith.constant 0 : i32
    %c0_i32_0 = arith.constant 0 : i32
    return %arg0, %c0_i32 : i32, i32
  }
  func.func @transform_1(%arg0: i32) -> (i32, i32) {
    %c0_i32 = arith.constant 0 : i32
    %c0_i32_0 = arith.constant 0 : i32
    %c0_i32_1 = arith.constant 0 : i32
    return %c0_i32, %c0_i32_0 : i32, i32
  }
  func.func @transform_2(%arg0: i32) -> (i32, i32) {
    %c0_i32 = arith.constant 0 : i32
    %c0_i32_0 = arith.constant 0 : i32
    %c0_i32_1 = arith.constant 0 : i32
    return %c0_i32, %c0_i32_0 : i32, i32
  }
  func.func @transform_3(%arg0: i32) -> (i32, i32) {
    %c0_i32 = arith.constant 0 : i32
    %c0_i32_0 = arith.constant 0 : i32
    %c0_i32_1 = arith.constant 0 : i32
    return %c0_i32, %c0_i32_0 : i32, i32
  }
  func.func @transform_4(%arg0: i32) -> (i32, i32) {
    %c0_i32 = arith.constant 0 : i32
    %c0_i32_0 = arith.constant 0 : i32
    %c0_i32_1 = arith.constant 0 : i32
    return %c0_i32, %c0_i32_0 : i32, i32
  }
  func.func @transform_5(%arg0: i32) -> (i32, i32) {
    %c0_i32 = arith.constant 0 : i32
    %c0_i32_0 = arith.constant 0 : i32
    %c0_i32_1 = arith.constant 0 : i32
    return %c0_i32, %c0_i32_0 : i32, i32
  }
  func.func @transform_6(%arg0: i32) -> (i32, i32) {
    %c0_i32 = arith.constant 0 : i32
    %c0_i32_0 = arith.constant 0 : i32
    %c0_i32_1 = arith.constant 0 : i32
    return %c0_i32, %c0_i32_0 : i32, i32
  }
  func.func @transform_7(%arg0: i32) -> (i32, i32) {
    %c0_i32 = arith.constant 0 : i32
    %c0_i32_0 = arith.constant 0 : i32
    %c0_i32_1 = arith.constant 0 : i32
    return %c0_i32, %c0_i32_0 : i32, i32
  }
  func.func @transform_8(%arg0: i32) -> (i32, i32) {
    %c0_i32 = arith.constant 0 : i32
    %c0_i32_0 = arith.constant 0 : i32
    %c0_i32_1 = arith.constant 0 : i32
    return %c0_i32, %c0_i32_0 : i32, i32
  }
  func.func @transform_9(%arg0: i32) -> (i32, i32) {
    %c0_i32 = arith.constant 0 : i32
    %c0_i32_0 = arith.constant 0 : i32
    return %arg0, %c0_i32 : i32, i32
  }
}

</mosaic_0001>

<llo_original>
// kernel: tpu_custom_call.1
$region0: #{tpu_custom_call.1}
  #allocation0 [shape = 'u32[]', space=smem, size = 0x4, offset = 0x4, fixed_abs, tag = 'smem constant byte address 0x4 - core index']
  #allocation1 [shape = 'u32[144,128]{1,0:T(1,128)}', space=vmem, size = 0x12000, scoped, tag = 'internal scratch']
  #allocation2 [shape = 'f32[1,1]{1,0:T(1,128)S(1)}', space=vmem, size = 0x200, scoped, tag = 'scoped memory for tpu_custom_call.1']
  %s0 = inlined_call_operand.hbm [shape: f32[8,128], index: 0, kind: input, shape index: {}]
  %s1 = inlined_call_operand.hbm [shape: bf16[128,1024], index: 1, kind: input, shape index: {}]
  %s2 = inlined_call_operand.vmem [shape: f32[1,1024], index: 2, kind: input, shape index: {}]
  %s3 = inlined_call_operand.hbm [shape: bf16[1024,512], index: 3, kind: input, shape index: {}]
  %s4 = inlined_call_operand.vmem [shape: f32[1,512], index: 4, kind: input, shape index: {}]
  %s5 = inlined_call_operand.hbm [shape: bf16[512,256], index: 5, kind: input, shape index: {}]
  %s6 = inlined_call_operand.vmem [shape: f32[1,256], index: 6, kind: input, shape index: {}]
  %s7 = inlined_call_operand.vmem [shape: f32[1,256], index: 7, kind: input, shape index: {}]
  %s8 = inlined_call_operand.<no memory space> [shape: f32[1,1], index: 8, kind: input, shape index: {}]
  %s9 = inlined_call_operand.vmem [shape: f32[8,1], index: 9, kind: output, shape index: {}]
  %s10 = sld [smem:[#allocation0]]
  $region62: #{tpu_custom_call.1} parent=0
    _
  %s12 = ssub.s32 1, %s10
  %s13 = scalar_select 0, %s12, %s10
  %v14 = vstv %s8
  %15 = vst [vmem:[#allocation2] sm:$0x1] %v14
  $region1: #{tpu_custom_call.1} parent=0
    #allocation3 [shape = 'u8[4096]{0}', space=vmem, size = 0x1000, scoped, tag = 'input window, operand 0, single buffered']
    #allocation4 [shape = 's32[1]{0}', space=sflag, size = 0x4, scoped, tag = 'scoped memory for tpu_custom_call.1']
    #allocation5 [shape = 'u8[262144]{0}', space=vmem, size = 0x40000, scoped, tag = 'input window, operand 1, single buffered']
    #allocation6 [shape = 's32[1]{0}', space=sflag, size = 0x4, scoped, tag = 'scoped memory for tpu_custom_call.1']
    #allocation7 [shape = 'u8[1048576]{0}', space=vmem, size = 0x100000, scoped, tag = 'input window, operand 3, single buffered']
    #allocation8 [shape = 'u8[262144]{0}', space=vmem, size = 0x40000, scoped, tag = 'input window, operand 5, single buffered']
    #allocation9 [shape = 's32[1]{0}', space=sflag, size = 0x4, scoped, tag = 'scoped memory for tpu_custom_call.1']
    %16 = vsyncpa [#allocation4], 0
    %17 = vsyncpa [#allocation6], 0
    %18 = vsyncpa [#allocation9], 0
    // Predicated region
    $region2: #{tpu_custom_call.1} parent=1 // pred_check
      _
    $region3: #{tpu_custom_call.1} parent=1 // pred_check_branch
      %20 = sbr.rel (0) target = $region5
    $region4: #{tpu_custom_call.1} parent=1 // pred_region
      %s22 = ssub.s32 128, 128
      %23 = vsyncadd [#allocation4], %s22
      %s25 = sshll.u32 [#allocation3], 4
      %s26 = int_to_ptr.vmem [resolvable:$true] %s25
      %28 = dma.hbm_to_vmem [thread:$0]  %s0, 128, %s26, [#allocation4]
    $region5: #{tpu_custom_call.1} parent=1 // pred_fallthru
      _
    // Predicated region
    $region6: #{tpu_custom_call.1} parent=1 // pred_check
      _
    $region7: #{tpu_custom_call.1} parent=1 // pred_check_branch
      %30 = sbr.rel (0) target = $region9
    $region8: #{tpu_custom_call.1} parent=1 // pred_region
      %s32 = ssub.s32 8192, 8192
      %33 = vsyncadd [#allocation6], %s32
      %s34 = sshll.u32 [#allocation5], 4
      %s35 = int_to_ptr.vmem [resolvable:$true] %s34
      %40 = dma.hbm_to_vmem [thread:$0]  %s1, 8192, %s35, [#allocation6], 512, 512, 32
    $region9: #{tpu_custom_call.1} parent=1 // pred_fallthru
      _
    // Predicated region
    $region10: #{tpu_custom_call.1} parent=1 // pred_check
      _
    $region11: #{tpu_custom_call.1} parent=1 // pred_check_branch
      %42 = sbr.rel (0) target = $region13
    $region12: #{tpu_custom_call.1} parent=1 // pred_region
      _
    $region13: #{tpu_custom_call.1} parent=1 // pred_fallthru
      _
    // Predicated region
    $region14: #{tpu_custom_call.1} parent=1 // pred_check
      _
    $region15: #{tpu_custom_call.1} parent=1 // pred_check_branch
      %44 = sbr.rel (0) target = $region17
    $region16: #{tpu_custom_call.1} parent=1 // pred_region
      %s46 = ssub.s32 32768, 32768
      %47 = vsyncadd [#allocation6], %s46
      %s48 = sshll.u32 [#allocation7], 4
      %s49 = int_to_ptr.vmem [resolvable:$true] %s48
      %54 = dma.hbm_to_vmem [thread:$0]  %s3, 32768, %s49, [#allocation6], 256, 256, 16
    $region17: #{tpu_custom_call.1} parent=1 // pred_fallthru
      _
    // Predicated region
    $region18: #{tpu_custom_call.1} parent=1 // pred_check
      _
    $region19: #{tpu_custom_call.1} parent=1 // pred_check_branch
      %56 = sbr.rel (0) target = $region21
    $region20: #{tpu_custom_call.1} parent=1 // pred_region
      _
    $region21: #{tpu_custom_call.1} parent=1 // pred_fallthru
      _
    // Predicated region
    $region22: #{tpu_custom_call.1} parent=1 // pred_check
      _
    $region23: #{tpu_custom_call.1} parent=1 // pred_check_branch
      %58 = sbr.rel (0) target = $region25
    $region24: #{tpu_custom_call.1} parent=1 // pred_region
      %s60 = ssub.s32 8192, 8192
      %61 = vsyncadd [#allocation9], %s60
      %s62 = sshll.u32 [#allocation8], 4
      %s63 = int_to_ptr.vmem [resolvable:$true] %s62
      %68 = dma.hbm_to_vmem [thread:$0]  %s5, 8192, %s63, [#allocation9], 128, 128, 8
    $region25: #{tpu_custom_call.1} parent=1 // pred_fallthru
      _
    // Predicated region
    $region26: #{tpu_custom_call.1} parent=1 // pred_check
      _
    $region27: #{tpu_custom_call.1} parent=1 // pred_check_branch
      %70 = sbr.rel (0) target = $region29
    $region28: #{tpu_custom_call.1} parent=1 // pred_region
      _
    $region29: #{tpu_custom_call.1} parent=1 // pred_fallthru
      _
    // Predicated region
    $region30: #{tpu_custom_call.1} parent=1 // pred_check
      _
    $region31: #{tpu_custom_call.1} parent=1 // pred_check_branch
      %72 = sbr.rel (0) target = $region33
    $region32: #{tpu_custom_call.1} parent=1 // pred_region
      _
    $region33: #{tpu_custom_call.1} parent=1 // pred_fallthru
      _
    // Predicated region
    $region34: #{tpu_custom_call.1} parent=1 // pred_check
      _
    $region35: #{tpu_custom_call.1} parent=1 // pred_check_branch
      %74 = sbr.rel (0) target = $region37
    $region36: #{tpu_custom_call.1} parent=1 // pred_region
      _
    $region37: #{tpu_custom_call.1} parent=1 // pred_fallthru
      _
    // Predicated region
    $region38: #{tpu_custom_call.1} parent=1 // pred_check
      _
    $region39: #{tpu_custom_call.1} parent=1 // pred_check_branch
      %76 = sbr.rel (0) target = $region41
    $region40: #{tpu_custom_call.1} parent=1 // pred_region
      %77 = dma.done [#allocation4], 128
    $region41: #{tpu_custom_call.1} parent=1 // pred_fallthru
      _
    // Predicated region
    $region42: #{tpu_custom_call.1} parent=1 // pred_check
      _
    $region43: #{tpu_custom_call.1} parent=1 // pred_check_branch
      %79 = sbr.rel (0) target = $region45
    $region44: #{tpu_custom_call.1} parent=1 // pred_region
      %80 = dma.done [#allocation6], 8192
    $region45: #{tpu_custom_call.1} parent=1 // pred_fallthru
      _
    // Predicated region
    $region46: #{tpu_custom_call.1} parent=1 // pred_check
      _
    $region47: #{tpu_custom_call.1} parent=1 // pred_check_branch
      %82 = sbr.rel (0) target = $region49
    $region48: #{tpu_custom_call.1} parent=1 // pred_region
      %83 = dma.done [#allocation6], 32768
    $region49: #{tpu_custom_call.1} parent=1 // pred_fallthru
      _
    // Predicated region
    $region50: #{tpu_custom_call.1} parent=1 // pred_check
      _
    $region51: #{tpu_custom_call.1} parent=1 // pred_check_branch
      %85 = sbr.rel (0) target = $region53
    $region52: #{tpu_custom_call.1} parent=1 // pred_region
      %86 = dma.done [#allocation9], 8192
    $region53: #{tpu_custom_call.1} parent=1 // pred_fallthru
      _
    %v88 = vld [vmem:[#allocation3] sm:$0xff]
    %v89 = vpack.c.bf16 %v88, %v88
    %v90 = vld [vmem:[#allocation5] sm:$0xff]
    %v91 = vld [vmem:[#allocation5 + $0x8] sm:$0xff]
    %v92 = vld [vmem:[#allocation5 + $0x10] sm:$0xff]
    %v93 = vld [vmem:[#allocation5 + $0x18] sm:$0xff]
    %v94 = vld [vmem:[#allocation5 + $0x20] sm:$0xff]
    %v95 = vld [vmem:[#allocation5 + $0x28] sm:$0xff]
    %v96 = vld [vmem:[#allocation5 + $0x30] sm:$0xff]
    %v97 = vld [vmem:[#allocation5 + $0x38] sm:$0xff]
    %v98 = vld [vmem:[#allocation5 + $0x40] sm:$0xff]
    %v99 = vld [vmem:[#allocation5 + $0x48] sm:$0xff]
    %v100 = vld [vmem:[#allocation5 + $0x50] sm:$0xff]
    %v101 = vld [vmem:[#allocation5 + $0x58] sm:$0xff]
    %v102 = vld [vmem:[#allocation5 + $0x60] sm:$0xff]
    %v103 = vld [vmem:[#allocation5 + $0x68] sm:$0xff]
    %v104 = vld [vmem:[#allocation5 + $0x70] sm:$0xff]
    %v105 = vld [vmem:[#allocation5 + $0x78] sm:$0xff]
    %v106 = vld [vmem:[#allocation5 + $0x80] sm:$0xff]
    %v107 = vld [vmem:[#allocation5 + $0x88] sm:$0xff]
    %v108 = vld [vmem:[#allocation5 + $0x90] sm:$0xff]
    %v109 = vld [vmem:[#allocation5 + $0x98] sm:$0xff]
    %v110 = vld [vmem:[#allocation5 + $0xa0] sm:$0xff]
    %v111 = vld [vmem:[#allocation5 + $0xa8] sm:$0xff]
    %v112 = vld [vmem:[#allocation5 + $0xb0] sm:$0xff]
    %v113 = vld [vmem:[#allocation5 + $0xb8] sm:$0xff]
    %v114 = vld [vmem:[#allocation5 + $0xc0] sm:$0xff]
    %v115 = vld [vmem:[#allocation5 + $0xc8] sm:$0xff]
    %v116 = vld [vmem:[#allocation5 + $0xd0] sm:$0xff]
    %v117 = vld [vmem:[#allocation5 + $0xd8] sm:$0xff]
    %v118 = vld [vmem:[#allocation5 + $0xe0] sm:$0xff]
    %v119 = vld [vmem:[#allocation5 + $0xe8] sm:$0xff]
    %v120 = vld [vmem:[#allocation5 + $0xf0] sm:$0xff]
    %v121 = vld [vmem:[#allocation5 + $0xf8] sm:$0xff]
    %v122 = vld [vmem:[#allocation5 + $0x100] sm:$0xff]
    %v123 = vld [vmem:[#allocation5 + $0x108] sm:$0xff]
    %v124 = vld [vmem:[#allocation5 + $0x110] sm:$0xff]
    %v125 = vld [vmem:[#allocation5 + $0x118] sm:$0xff]
    %v126 = vld [vmem:[#allocation5 + $0x120] sm:$0xff]
    %v127 = vld [vmem:[#allocation5 + $0x128] sm:$0xff]
    %v128 = vld [vmem:[#allocation5 + $0x130] sm:$0xff]
    %v129 = vld [vmem:[#allocation5 + $0x138] sm:$0xff]
    %v130 = vld [vmem:[#allocation5 + $0x140] sm:$0xff]
    %v131 = vld [vmem:[#allocation5 + $0x148] sm:$0xff]
    %v132 = vld [vmem:[#allocation5 + $0x150] sm:$0xff]
    %v133 = vld [vmem:[#allocation5 + $0x158] sm:$0xff]
    %v134 = vld [vmem:[#allocation5 + $0x160] sm:$0xff]
    %v135 = vld [vmem:[#allocation5 + $0x168] sm:$0xff]
    %v136 = vld [vmem:[#allocation5 + $0x170] sm:$0xff]
    %v137 = vld [vmem:[#allocation5 + $0x178] sm:$0xff]
    %v138 = vld [vmem:[#allocation5 + $0x180] sm:$0xff]
    %v139 = vld [vmem:[#allocation5 + $0x188] sm:$0xff]
    %v140 = vld [vmem:[#allocation5 + $0x190] sm:$0xff]
    %v141 = vld [vmem:[#allocation5 + $0x198] sm:$0xff]
    %v142 = vld [vmem:[#allocation5 + $0x1a0] sm:$0xff]
    %v143 = vld [vmem:[#allocation5 + $0x1a8] sm:$0xff]
    %v144 = vld [vmem:[#allocation5 + $0x1b0] sm:$0xff]
    %v145 = vld [vmem:[#allocation5 + $0x1b8] sm:$0xff]
    %v146 = vld [vmem:[#allocation5 + $0x1c0] sm:$0xff]
    %v147 = vld [vmem:[#allocation5 + $0x1c8] sm:$0xff]
    %v148 = vld [vmem:[#allocation5 + $0x1d0] sm:$0xff]
    %v149 = vld [vmem:[#allocation5 + $0x1d8] sm:$0xff]
    %v150 = vld [vmem:[#allocation5 + $0x1e0] sm:$0xff]
    %v151 = vld [vmem:[#allocation5 + $0x1e8] sm:$0xff]
    %v152 = vld [vmem:[#allocation5 + $0x1f0] sm:$0xff]
    %v153 = vld [vmem:[#allocation5 + $0x1f8] sm:$0xff]
    %v154 = vld [vmem:[%s2] sm:$0xff]
    %v156 = vlaneseq
    %v157 = vshrl.u32 %v156, 7
    %v158 = vsub.s32 0, %v157
    %v159 = vrot.slane %v154, %v158
    %v160 = vlaneseq
    %v161 = vshrl.u32 %v160, 7
    %v162 = vsub.s32 1, %v161
    %v163 = vrot.slane %v154, %v162
    %v164 = vlaneseq
    %v165 = vshrl.u32 %v164, 7
    %v166 = vsub.s32 2, %v165
    %v167 = vrot.slane %v154, %v166
    %v168 = vlaneseq
    %v169 = vshrl.u32 %v168, 7
    %v170 = vsub.s32 3, %v169
    %v171 = vrot.slane %v154, %v170
    %v172 = vlaneseq
    %v173 = vshrl.u32 %v172, 7
    %v174 = vsub.s32 4, %v173
    %v175 = vrot.slane %v154, %v174
    %v176 = vlaneseq
    %v177 = vshrl.u32 %v176, 7
    %v178 = vsub.s32 5, %v177
    %v179 = vrot.slane %v154, %v178
    %v180 = vlaneseq
    %v181 = vshrl.u32 %v180, 7
    %v182 = vsub.s32 6, %v181
    %v183 = vrot.slane %v154, %v182
    %v184 = vlaneseq
    %v185 = vshrl.u32 %v184, 7
    %v186 = vsub.s32 7, %v185
    %v187 = vrot.slane %v154, %v186
    %v260 = vunpack.c.l.b16 %v90
    %v261 = vunpack.c.h.b16 %v90
    %v262 = vunpack.c.l.b16 %v91
    %v263 = vunpack.c.h.b16 %v91
    %v264 = vunpack.c.l.b16 %v92
    %v265 = vunpack.c.h.b16 %v92
    %v266 = vunpack.c.l.b16 %v93
    %v267 = vunpack.c.h.b16 %v93
    %v268 = vunpack.c.l.b16 %v94
    %v269 = vunpack.c.h.b16 %v94
    %v270 = vunpack.c.l.b16 %v95
    %v271 = vunpack.c.h.b16 %v95
    %v272 = vunpack.c.l.b16 %v96
    %v273 = vunpack.c.h.b16 %v96
    %v274 = vunpack.c.l.b16 %v97
    %v275 = vunpack.c.h.b16 %v97
    %v276 = vunpack.c.l.b16 %v98
    %v277 = vunpack.c.h.b16 %v98
    %v278 = vunpack.c.l.b16 %v99
    %v279 = vunpack.c.h.b16 %v99
    %v280 = vunpack.c.l.b16 %v100
    %v281 = vunpack.c.h.b16 %v100
    %v282 = vunpack.c.l.b16 %v101
    %v283 = vunpack.c.h.b16 %v101
    %v284 = vunpack.c.l.b16 %v102
    %v285 = vunpack.c.h.b16 %v102
    %v286 = vunpack.c.l.b16 %v103
    %v287 = vunpack.c.h.b16 %v103
    %v288 = vunpack.c.l.b16 %v104
    %v289 = vunpack.c.h.b16 %v104
    %v290 = vunpack.c.l.b16 %v105
    %v291 = vunpack.c.h.b16 %v105
    %v292 = vunpack.c.l.b16 %v106
    %v293 = vunpack.c.h.b16 %v106
    %v294 = vunpack.c.l.b16 %v107
    %v295 = vunpack.c.h.b16 %v107
    %v296 = vunpack.c.l.b16 %v108
    %v297 = vunpack.c.h.b16 %v108
    %v298 = vunpack.c.l.b16 %v109
    %v299 = vunpack.c.h.b16 %v109
    %v300 = vunpack.c.l.b16 %v110
    %v301 = vunpack.c.h.b16 %v110
    %v302 = vunpack.c.l.b16 %v111
    %v303 = vunpack.c.h.b16 %v111
    %v304 = vunpack.c.l.b16 %v112
    %v305 = vunpack.c.h.b16 %v112
    %v306 = vunpack.c.l.b16 %v113
    %v307 = vunpack.c.h.b16 %v113
    %v308 = vunpack.c.l.b16 %v114
    %v309 = vunpack.c.h.b16 %v114
    %v310 = vunpack.c.l.b16 %v115
    %v311 = vunpack.c.h.b16 %v115
    %v312 = vunpack.c.l.b16 %v116
    %v313 = vunpack.c.h.b16 %v116
    %v314 = vunpack.c.l.b16 %v117
    %v315 = vunpack.c.h.b16 %v117
    %v316 = vunpack.c.l.b16 %v118
    %v317 = vunpack.c.h.b16 %v118
    %v318 = vunpack.c.l.b16 %v119
    %v319 = vunpack.c.h.b16 %v119
    %v320 = vunpack.c.l.b16 %v120
    %v321 = vunpack.c.h.b16 %v120
    %v322 = vunpack.c.l.b16 %v121
    %v323 = vunpack.c.h.b16 %v121
    %v324 = vunpack.c.l.b16 %v122
    %v325 = vunpack.c.h.b16 %v122
    %v326 = vunpack.c.l.b16 %v123
    %v327 = vunpack.c.h.b16 %v123
    %v328 = vunpack.c.l.b16 %v124
    %v329 = vunpack.c.h.b16 %v124
    %v330 = vunpack.c.l.b16 %v125
    %v331 = vunpack.c.h.b16 %v125
    %v332 = vunpack.c.l.b16 %v126
    %v333 = vunpack.c.h.b16 %v126
    %v334 = vunpack.c.l.b16 %v127
    %v335 = vunpack.c.h.b16 %v127
    %v336 = vunpack.c.l.b16 %v128
    %v337 = vunpack.c.h.b16 %v128
    %v338 = vunpack.c.l.b16 %v129
    %v339 = vunpack.c.h.b16 %v129
    %v340 = vunpack.c.l.b16 %v130
    %v341 = vunpack.c.h.b16 %v130
    %v342 = vunpack.c.l.b16 %v131
    %v343 = vunpack.c.h.b16 %v131
    %v344 = vunpack.c.l.b16 %v132
    %v345 = vunpack.c.h.b16 %v132
    %v346 = vunpack.c.l.b16 %v133
    %v347 = vunpack.c.h.b16 %v133
    %v348 = vunpack.c.l.b16 %v134
    %v349 = vunpack.c.h.b16 %v134
    %v350 = vunpack.c.l.b16 %v135
    %v351 = vunpack.c.h.b16 %v135
    %v352 = vunpack.c.l.b16 %v136
    %v353 = vunpack.c.h.b16 %v136
    %v354 = vunpack.c.l.b16 %v137
    %v355 = vunpack.c.h.b16 %v137
    %v356 = vunpack.c.l.b16 %v138
    %v357 = vunpack.c.h.b16 %v138
    %v358 = vunpack.c.l.b16 %v139
    %v359 = vunpack.c.h.b16 %v139
    %v360 = vunpack.c.l.b16 %v140
    %v361 = vunpack.c.h.b16 %v140
    %v362 = vunpack.c.l.b16 %v141
    %v363 = vunpack.c.h.b16 %v141
    %v364 = vunpack.c.l.b16 %v142
    %v365 = vunpack.c.h.b16 %v142
    %v366 = vunpack.c.l.b16 %v143
    %v367 = vunpack.c.h.b16 %v143
    %v368 = vunpack.c.l.b16 %v144
    %v369 = vunpack.c.h.b16 %v144
    %v370 = vunpack.c.l.b16 %v145
    %v371 = vunpack.c.h.b16 %v145
    %v372 = vunpack.c.l.b16 %v146
    %v373 = vunpack.c.h.b16 %v146
    %v374 = vunpack.c.l.b16 %v147
    %v375 = vunpack.c.h.b16 %v147
    %v376 = vunpack.c.l.b16 %v148
    %v377 = vunpack.c.h.b16 %v148
    %v378 = vunpack.c.l.b16 %v149
    %v379 = vunpack.c.h.b16 %v149
    %v380 = vunpack.c.l.b16 %v150
    %v381 = vunpack.c.h.b16 %v150
    %v382 = vunpack.c.l.b16 %v151
    %v383 = vunpack.c.h.b16 %v151
    %v384 = vunpack.c.l.b16 %v152
    %v385 = vunpack.c.h.b16 %v152
    %v386 = vunpack.c.l.b16 %v153
    %v387 = vunpack.c.h.b16 %v153
    %v388 = vpack.c.b16 %v268, %v260
    %v389 = vpack.c.b16 %v269, %v261
    %v390 = vpack.c.b16 %v270, %v262
    %v391 = vpack.c.b16 %v271, %v263
    %v392 = vpack.c.b16 %v272, %v264
    %v393 = vpack.c.b16 %v273, %v265
    %v394 = vpack.c.b16 %v274, %v266
    %v395 = vpack.c.b16 %v275, %v267
    %v396 = vpack.c.b16 %v284, %v276
    %v397 = vpack.c.b16 %v285, %v277
    %v398 = vpack.c.b16 %v286, %v278
    %v399 = vpack.c.b16 %v287, %v279
    %v400 = vpack.c.b16 %v288, %v280
    %v401 = vpack.c.b16 %v289, %v281
    %v402 = vpack.c.b16 %v290, %v282
    %v403 = vpack.c.b16 %v291, %v283
    %v404 = vpack.c.b16 %v300, %v292
    %v405 = vpack.c.b16 %v301, %v293
    %v406 = vpack.c.b16 %v302, %v294
    %v407 = vpack.c.b16 %v303, %v295
    %v408 = vpack.c.b16 %v304, %v296
    %v409 = vpack.c.b16 %v305, %v297
    %v410 = vpack.c.b16 %v306, %v298
    %v411 = vpack.c.b16 %v307, %v299
    %v412 = vpack.c.b16 %v316, %v308
    %v413 = vpack.c.b16 %v317, %v309
    %v414 = vpack.c.b16 %v318, %v310
    %v415 = vpack.c.b16 %v319, %v311
    %v416 = vpack.c.b16 %v320, %v312
    %v417 = vpack.c.b16 %v321, %v313
    %v418 = vpack.c.b16 %v322, %v314
    %v419 = vpack.c.b16 %v323, %v315
    %v420 = vpack.c.b16 %v332, %v324
    %v421 = vpack.c.b16 %v333, %v325
    %v422 = vpack.c.b16 %v334, %v326
    %v423 = vpack.c.b16 %v335, %v327
    %v424 = vpack.c.b16 %v336, %v328
    %v425 = vpack.c.b16 %v337, %v329
    %v426 = vpack.c.b16 %v338, %v330
    %v427 = vpack.c.b16 %v339, %v331
    %v428 = vpack.c.b16 %v348, %v340
    %v429 = vpack.c.b16 %v349, %v341
    %v430 = vpack.c.b16 %v350, %v342
    %v431 = vpack.c.b16 %v351, %v343
    %v432 = vpack.c.b16 %v352, %v344
    %v433 = vpack.c.b16 %v353, %v345
    %v434 = vpack.c.b16 %v354, %v346
    %v435 = vpack.c.b16 %v355, %v347
    %v436 = vpack.c.b16 %v364, %v356
    %v437 = vpack.c.b16 %v365, %v357
    %v438 = vpack.c.b16 %v366, %v358
    %v439 = vpack.c.b16 %v367, %v359
    %v440 = vpack.c.b16 %v368, %v360
    %v441 = vpack.c.b16 %v369, %v361
    %v442 = vpack.c.b16 %v370, %v362
    %v443 = vpack.c.b16 %v371, %v363
    %v444 = vpack.c.b16 %v380, %v372
    %v445 = vpack.c.b16 %v381, %v373
    %v446 = vpack.c.b16 %v382, %v374
    %v447 = vpack.c.b16 %v383, %v375
    %v448 = vpack.c.b16 %v384, %v376
    %v449 = vpack.c.b16 %v385, %v377
    %v450 = vpack.c.b16 %v386, %v378
    %v451 = vpack.c.b16 %v387, %v379
    %516 = vmatprep.subr.bf16.mxu0 %v389
    %517 = vmatpush1.bf16.msra.mxu0 %v388
    %518 = vmatprep.subr.bf16.mxu0 %v397
    %519 = vmatpush1.bf16.msra.mxu0 %v396
    %520 = vmatprep.subr.bf16.mxu0 %v405
    %521 = vmatpush1.bf16.msra.mxu0 %v404
    %522 = vmatprep.subr.bf16.mxu0 %v413
    %523 = vmatpush1.bf16.msra.mxu0 %v412
    %524 = vmatprep.subr.bf16.mxu0 %v421
    %525 = vmatpush1.bf16.msra.mxu0 %v420
    %526 = vmatprep.subr.bf16.mxu0 %v429
    %527 = vmatpush1.bf16.msra.mxu0 %v428
    %528 = vmatprep.subr.bf16.mxu0 %v437
    %529 = vmatpush1.bf16.msra.mxu0 %v436
    %530 = vmatprep.subr.bf16.mxu0 %v445
    %531 = vmatpush1.bf16.msra.mxu0 %v444
    %532 = vmatprep.subr.bf16.mxu0 0
    %533 = vmatpush1.bf16.msra.mxu0 0
    %534 = vmatprep.subr.bf16.mxu0 0
    %535 = vmatpush1.bf16.msra.mxu0 0
    %536 = vmatprep.subr.bf16.mxu0 0
    %537 = vmatpush1.bf16.msra.mxu0 0
    %538 = vmatprep.subr.bf16.mxu0 0
    %539 = vmatpush1.bf16.msra.mxu0 0
    %540 = vmatprep.subr.bf16.mxu0 0
    %541 = vmatpush1.bf16.msra.mxu0 0
    %542 = vmatprep.subr.bf16.mxu0 0
    %543 = vmatpush1.bf16.msra.mxu0 0
    %544 = vmatprep.subr.bf16.mxu0 0
    %545 = vmatpush1.bf16.msra.mxu0 0
    %546 = vmatprep.subr.bf16.mxu0 0
    %547 = vmatpush1.bf16.msra.mxu0 0
    %548 = vmatprep.mubr.bf16.mxu0 0
    %549 = vmatmul.mubr.bf16.gmra.mrb[0].mxu0 %v89
    %v550 = vpop.f32.mrb[0].mxu0
    %v551 = vadd.f32 %v159, %v550
    %v552 = vpop.f32.mrb[0].mxu0
    %v553 = vadd.f32 %v163, %v552
    %v554 = vpop.f32.mrb[0].mxu0
    %v555 = vpop.f32.mrb[0].mxu0
    %556 = vdwg.mxu0
    %557 = vmatprep.subr.bf16.mxu0 %v391
    %558 = vmatpush1.bf16.msra.mxu0 %v390
    %559 = vmatprep.subr.bf16.mxu0 %v399
    %560 = vmatpush1.bf16.msra.mxu0 %v398
    %561 = vmatprep.subr.bf16.mxu0 %v407
    %562 = vmatpush1.bf16.msra.mxu0 %v406
    %563 = vmatprep.subr.bf16.mxu0 %v415
    %564 = vmatpush1.bf16.msra.mxu0 %v414
    %565 = vmatprep.subr.bf16.mxu0 %v423
    %566 = vmatpush1.bf16.msra.mxu0 %v422
    %567 = vmatprep.subr.bf16.mxu0 %v431
    %568 = vmatpush1.bf16.msra.mxu0 %v430
    %569 = vmatprep.subr.bf16.mxu0 %v439
    %570 = vmatpush1.bf16.msra.mxu0 %v438
    %571 = vmatprep.subr.bf16.mxu0 %v447
    %572 = vmatpush1.bf16.msra.mxu0 %v446
    %573 = vmatprep.subr.bf16.mxu0 0
    %574 = vmatpush1.bf16.msra.mxu0 0
    %575 = vmatprep.subr.bf16.mxu0 0
    %576 = vmatpush1.bf16.msra.mxu0 0
    %577 = vmatprep.subr.bf16.mxu0 0
    %578 = vmatpush1.bf16.msra.mxu0 0
    %579 = vmatprep.subr.bf16.mxu0 0
    %580 = vmatpush1.bf16.msra.mxu0 0
    %581 = vmatprep.subr.bf16.mxu0 0
    %582 = vmatpush1.bf16.msra.mxu0 0
    %583 = vmatprep.subr.bf16.mxu0 0
    %584 = vmatpush1.bf16.msra.mxu0 0
    %585 = vmatprep.subr.bf16.mxu0 0
    %586 = vmatpush1.bf16.msra.mxu0 0
    %587 = vmatprep.subr.bf16.mxu0 0
    %588 = vmatpush1.bf16.msra.mxu0 0
    %589 = vmatprep.mubr.bf16.mxu0 0
    %590 = vmatmul.mubr.bf16.gmra.mrb[0].mxu0 %v89
    %v591 = vpop.f32.mrb[0].mxu0
    %v592 = vadd.f32 %v167, %v591
    %v593 = vpop.f32.mrb[0].mxu0
    %v594 = vadd.f32 %v171, %v593
    %v595 = vpop.f32.mrb[0].mxu0
    %v596 = vpop.f32.mrb[0].mxu0
    %597 = vdwg.mxu0
    %598 = vmatprep.subr.bf16.mxu0 %v393
    %599 = vmatpush1.bf16.msra.mxu0 %v392
    %600 = vmatprep.subr.bf16.mxu0 %v401
    %601 = vmatpush1.bf16.msra.mxu0 %v400
    %602 = vmatprep.subr.bf16.mxu0 %v409
    %603 = vmatpush1.bf16.msra.mxu0 %v408
    %604 = vmatprep.subr.bf16.mxu0 %v417
    %605 = vmatpush1.bf16.msra.mxu0 %v416
    %606 = vmatprep.subr.bf16.mxu0 %v425
    %607 = vmatpush1.bf16.msra.mxu0 %v424
    %608 = vmatprep.subr.bf16.mxu0 %v433
    %609 = vmatpush1.bf16.msra.mxu0 %v432
    %610 = vmatprep.subr.bf16.mxu0 %v441
    %611 = vmatpush1.bf16.msra.mxu0 %v440
    %612 = vmatprep.subr.bf16.mxu0 %v449
    %613 = vmatpush1.bf16.msra.mxu0 %v448
    %614 = vmatprep.subr.bf16.mxu0 0
    %615 = vmatpush1.bf16.msra.mxu0 0
    %616 = vmatprep.subr.bf16.mxu0 0
    %617 = vmatpush1.bf16.msra.mxu0 0
    %618 = vmatprep.subr.bf16.mxu0 0
    %619 = vmatpush1.bf16.msra.mxu0 0
    %620 = vmatprep.subr.bf16.mxu0 0
    %621 = vmatpush1.bf16.msra.mxu0 0
    %622 = vmatprep.subr.bf16.mxu0 0
    %623 = vmatpush1.bf16.msra.mxu0 0
    %624 = vmatprep.subr.bf16.mxu0 0
    %625 = vmatpush1.bf16.msra.mxu0 0
    %626 = vmatprep.subr.bf16.mxu0 0
    %627 = vmatpush1.bf16.msra.mxu0 0
    %628 = vmatprep.subr.bf16.mxu0 0
    %629 = vmatpush1.bf16.msra.mxu0 0
    %630 = vmatprep.mubr.bf16.mxu0 0
    %631 = vmatmul.mubr.bf16.gmra.mrb[0].mxu0 %v89
    %v632 = vpop.f32.mrb[0].mxu0
    %v633 = vadd.f32 %v175, %v632
    %v634 = vpop.f32.mrb[0].mxu0
    %v635 = vadd.f32 %v179, %v634
    %v636 = vpop.f32.mrb[0].mxu0
    %v637 = vpop.f32.mrb[0].mxu0
    %638 = vdwg.mxu0
    %639 = vmatprep.subr.bf16.mxu0 %v395
    %640 = vmatpush1.bf16.msra.mxu0 %v394
    %641 = vmatprep.subr.bf16.mxu0 %v403
    %642 = vmatpush1.bf16.msra.mxu0 %v402
    %643 = vmatprep.subr.bf16.mxu0 %v411
    %644 = vmatpush1.bf16.msra.mxu0 %v410
    %645 = vmatprep.subr.bf16.mxu0 %v419
    %646 = vmatpush1.bf16.msra.mxu0 %v418
    %647 = vmatprep.subr.bf16.mxu0 %v427
    %648 = vmatpush1.bf16.msra.mxu0 %v426
    %649 = vmatprep.subr.bf16.mxu0 %v435
    %650 = vmatpush1.bf16.msra.mxu0 %v434
    %651 = vmatprep.subr.bf16.mxu0 %v443
    %652 = vmatpush1.bf16.msra.mxu0 %v442
    %653 = vmatprep.subr.bf16.mxu0 %v451
    %654 = vmatpush1.bf16.msra.mxu0 %v450
    %655 = vmatprep.subr.bf16.mxu0 0
    %656 = vmatpush1.bf16.msra.mxu0 0
    %657 = vmatprep.subr.bf16.mxu0 0
    %658 = vmatpush1.bf16.msra.mxu0 0
    %659 = vmatprep.subr.bf16.mxu0 0
    %660 = vmatpush1.bf16.msra.mxu0 0
    %661 = vmatprep.subr.bf16.mxu0 0
    %662 = vmatpush1.bf16.msra.mxu0 0
    %663 = vmatprep.subr.bf16.mxu0 0
    %664 = vmatpush1.bf16.msra.mxu0 0
    %665 = vmatprep.subr.bf16.mxu0 0
    %666 = vmatpush1.bf16.msra.mxu0 0
    %667 = vmatprep.subr.bf16.mxu0 0
    %668 = vmatpush1.bf16.msra.mxu0 0
    %669 = vmatprep.subr.bf16.mxu0 0
    %670 = vmatpush1.bf16.msra.mxu0 0
    %671 = vmatprep.mubr.bf16.mxu0 0
    %672 = vmatmul.mubr.bf16.gmra.mrb[0].mxu0 %v89
    %v673 = vpop.f32.mrb[0].mxu0
    %v674 = vadd.f32 %v183, %v673
    %v675 = vpop.f32.mrb[0].mxu0
    %v676 = vadd.f32 %v187, %v675
    %v677 = vpop.f32.mrb[0].mxu0
    %v678 = vpop.f32.mrb[0].mxu0
    %679 = vdwg.mxu0
    %vm680 = vcmp.ge.f32.partialorder %v551, 0.0
    %vm681 = vcmp.ge.f32.partialorder %v553, 0.0
    %vm682 = vcmp.ge.f32.partialorder %v592, 0.0
    %vm683 = vcmp.ge.f32.partialorder %v594, 0.0
    %vm684 = vcmp.ge.f32.partialorder %v633, 0.0
    %vm685 = vcmp.ge.f32.partialorder %v635, 0.0
    %vm686 = vcmp.ge.f32.partialorder %v674, 0.0
    %vm687 = vcmp.ge.f32.partialorder %v676, 0.0
    %v688 = vmul.f32 %v551, 0.2
    %v689 = vmul.f32 %v553, 0.2
    %v690 = vmul.f32 %v592, 0.2
    %v691 = vmul.f32 %v594, 0.2
    %v692 = vmul.f32 %v633, 0.2
    %v693 = vmul.f32 %v635, 0.2
    %v694 = vmul.f32 %v674, 0.2
    %v695 = vmul.f32 %v676, 0.2
    %v696 = vsel %vm680, %v551, %v688
    %v697 = vsel %vm681, %v553, %v689
    %v698 = vsel %vm682, %v592, %v690
    %v699 = vsel %vm683, %v594, %v691
    %v700 = vsel %vm684, %v633, %v692
    %v701 = vsel %vm685, %v635, %v693
    %v702 = vsel %vm686, %v674, %v694
    %v703 = vsel %vm687, %v676, %v695
    %v704 = vpack.c.bf16 %v696, %v696
    %v705 = vpack.c.bf16 %v697, %v697
    %v706 = vpack.c.bf16 %v698, %v698
    %v707 = vpack.c.bf16 %v699, %v699
    %v708 = vpack.c.bf16 %v700, %v700
    %v709 = vpack.c.bf16 %v701, %v701
    %v710 = vpack.c.bf16 %v702, %v702
    %v711 = vpack.c.bf16 %v703, %v703
    %v712 = vld [vmem:[#allocation7] sm:$0xff]
    %v713 = vld [vmem:[#allocation7 + $0x8] sm:$0xff]
    %v714 = vld [vmem:[#allocation7 + $0x10] sm:$0xff]
    %v715 = vld [vmem:[#allocation7 + $0x18] sm:$0xff]
    %v716 = vld [vmem:[#allocation7 + $0x20] sm:$0xff]
    %v717 = vld [vmem:[#allocation7 + $0x28] sm:$0xff]
    %v718 = vld [vmem:[#allocation7 + $0x30] sm:$0xff]
    %v719 = vld [vmem:[#allocation7 + $0x38] sm:$0xff]
    %v720 = vld [vmem:[#allocation7 + $0x40] sm:$0xff]
    %v721 = vld [vmem:[#allocation7 + $0x48] sm:$0xff]
    %v722 = vld [vmem:[#allocation7 + $0x50] sm:$0xff]
    %v723 = vld [vmem:[#allocation7 + $0x58] sm:$0xff]
    %v724 = vld [vmem:[#allocation7 + $0x60] sm:$0xff]
    %v725 = vld [vmem:[#allocation7 + $0x68] sm:$0xff]
    %v726 = vld [vmem:[#allocation7 + $0x70] sm:$0xff]
    %v727 = vld [vmem:[#allocation7 + $0x78] sm:$0xff]
    %v728 = vld [vmem:[#allocation7 + $0x80] sm:$0xff]
    %v729 = vld [vmem:[#allocation7 + $0x88] sm:$0xff]
    %v730 = vld [vmem:[#allocation7 + $0x90] sm:$0xff]
    %v731 = vld [vmem:[#allocation7 + $0x98] sm:$0xff]
    %v732 = vld [vmem:[#allocation7 + $0xa0] sm:$0xff]
    %v733 = vld [vmem:[#allocation7 + $0xa8] sm:$0xff]
    %v734 = vld [vmem:[#allocation7 + $0xb0] sm:$0xff]
    %v735 = vld [vmem:[#allocation7 + $0xb8] sm:$0xff]
    %v736 = vld [vmem:[#allocation7 + $0xc0] sm:$0xff]
    %v737 = vld [vmem:[#allocation7 + $0xc8] sm:$0xff]
    %v738 = vld [vmem:[#allocation7 + $0xd0] sm:$0xff]
    %v739 = vld [vmem:[#allocation7 + $0xd8] sm:$0xff]
    %v740 = vld [vmem:[#allocation7 + $0xe0] sm:$0xff]
    %v741 = vld [vmem:[#allocation7 + $0xe8] sm:$0xff]
    %v742 = vld [vmem:[#allocation7 + $0xf0] sm:$0xff]
    %v743 = vld [vmem:[#allocation7 + $0xf8] sm:$0xff]
    %v744 = vld [vmem:[#allocation7 + $0x100] sm:$0xff]
    %v745 = vld [vmem:[#allocation7 + $0x108] sm:$0xff]
    %v746 = vld [vmem:[#allocation7 + $0x110] sm:$0xff]
    %v747 = vld [vmem:[#allocation7 + $0x118] sm:$0xff]
    %v748 = vld [vmem:[#allocation7 + $0x120] sm:$0xff]
    %v749 = vld [vmem:[#allocation7 + $0x128] sm:$0xff]
    %v750 = vld [vmem:[#allocation7 + $0x130] sm:$0xff]
    %v751 = vld [vmem:[#allocation7 + $0x138] sm:$0xff]
    %v752 = vld [vmem:[#allocation7 + $0x140] sm:$0xff]
    %v753 = vld [vmem:[#allocation7 + $0x148] sm:$0xff]
    %v754 = vld [vmem:[#allocation7 + $0x150] sm:$0xff]
    %v755 = vld [vmem:[#allocation7 + $0x158] sm:$0xff]
    %v756 = vld [vmem:[#allocation7 + $0x160] sm:$0xff]
    %v757 = vld [vmem:[#allocation7 + $0x168] sm:$0xff]
    %v758 = vld [vmem:[#allocation7 + $0x170] sm:$0xff]
    %v759 = vld [vmem:[#allocation7 + $0x178] sm:$0xff]
    %v760 = vld [vmem:[#allocation7 + $0x180] sm:$0xff]
    %v761 = vld [vmem:[#allocation7 + $0x188] sm:$0xff]
    %v762 = vld [vmem:[#allocation7 + $0x190] sm:$0xff]
    %v763 = vld [vmem:[#allocation7 + $0x198] sm:$0xff]
    %v764 = vld [vmem:[#allocation7 + $0x1a0] sm:$0xff]
    %v765 = vld [vmem:[#allocation7 + $0x1a8] sm:$0xff]
    %v766 = vld [vmem:[#allocation7 + $0x1b0] sm:$0xff]
    %v767 = vld [vmem:[#allocation7 + $0x1b8] sm:$0xff]
    %v768 = vld [vmem:[#allocation7 + $0x1c0] sm:$0xff]
    %v769 = vld [vmem:[#allocation7 + $0x1c8] sm:$0xff]
    %v770 = vld [vmem:[#allocation7 + $0x1d0] sm:$0xff]
    %v771 = vld [vmem:[#allocation7 + $0x1d8] sm:$0xff]
    %v772 = vld [vmem:[#allocation7 + $0x1e0] sm:$0xff]
    %v773 = vld [vmem:[#allocation7 + $0x1e8] sm:$0xff]
    %v774 = vld [vmem:[#allocation7 + $0x1f0] sm:$0xff]
    %v775 = vld [vmem:[#allocation7 + $0x1f8] sm:$0xff]
    %v776 = vld [vmem:[#allocation7 + $0x200] sm:$0xff]
    %v777 = vld [vmem:[#allocation7 + $0x208] sm:$0xff]
    %v778 = vld [vmem:[#allocation7 + $0x210] sm:$0xff]
    %v779 = vld [vmem:[#allocation7 + $0x218] sm:$0xff]
    %v780 = vld [vmem:[#allocation7 + $0x220] sm:$0xff]
    %v781 = vld [vmem:[#allocation7 + $0x228] sm:$0xff]
    %v782 = vld [vmem:[#allocation7 + $0x230] sm:$0xff]
    %v783 = vld [vmem:[#allocation7 + $0x238] sm:$0xff]
    %v784 = vld [vmem:[#allocation7 + $0x240] sm:$0xff]
    %v785 = vld [vmem:[#allocation7 + $0x248] sm:$0xff]
    %v786 = vld [vmem:[#allocation7 + $0x250] sm:$0xff]
    %v787 = vld [vmem:[#allocation7 + $0x258] sm:$0xff]
    %v788 = vld [vmem:[#allocation7 + $0x260] sm:$0xff]
    %v789 = vld [vmem:[#allocation7 + $0x268] sm:$0xff]
    %v790 = vld [vmem:[#allocation7 + $0x270] sm:$0xff]
    %v791 = vld [vmem:[#allocation7 + $0x278] sm:$0xff]
    %v792 = vld [vmem:[#allocation7 + $0x280] sm:$0xff]
    %v793 = vld [vmem:[#allocation7 + $0x288] sm:$0xff]
    %v794 = vld [vmem:[#allocation7 + $0x290] sm:$0xff]
    %v795 = vld [vmem:[#allocation7 + $0x298] sm:$0xff]
    %v796 = vld [vmem:[#allocation7 + $0x2a0] sm:$0xff]
    %v797 = vld [vmem:[#allocation7 + $0x2a8] sm:$0xff]
    %v798 = vld [vmem:[#allocation7 + $0x2b0] sm:$0xff]
    %v799 = vld [vmem:[#allocation7 + $0x2b8] sm:$0xff]
    %v800 = vld [vmem:[#allocation7 + $0x2c0] sm:$0xff]
    %v801 = vld [vmem:[#allocation7 + $0x2c8] sm:$0xff]
    %v802 = vld [vmem:[#allocation7 + $0x2d0] sm:$0xff]
    %v803 = vld [vmem:[#allocation7 + $0x2d8] sm:$0xff]
    %v804 = vld [vmem:[#allocation7 + $0x2e0] sm:$0xff]
    %v805 = vld [vmem:[#allocation7 + $0x2e8] sm:$0xff]
    %v806 = vld [vmem:[#allocation7 + $0x2f0] sm:$0xff]
    %v807 = vld [vmem:[#allocation7 + $0x2f8] sm:$0xff]
    %v808 = vld [vmem:[#allocation7 + $0x300] sm:$0xff]
    %v809 = vld [vmem:[#allocation7 + $0x308] sm:$0xff]
    %v810 = vld [vmem:[#allocation7 + $0x310] sm:$0xff]
    %v811 = vld [vmem:[#allocation7 + $0x318] sm:$0xff]
    %v812 = vld [vmem:[#allocation7 + $0x320] sm:$0xff]
    %v813 = vld [vmem:[#allocation7 + $0x328] sm:$0xff]
    %v814 = vld [vmem:[#allocation7 + $0x330] sm:$0xff]
    %v815 = vld [vmem:[#allocation7 + $0x338] sm:$0xff]
    %v816 = vld [vmem:[#allocation7 + $0x340] sm:$0xff]
    %v817 = vld [vmem:[#allocation7 + $0x348] sm:$0xff]
    %v818 = vld [vmem:[#allocation7 + $0x350] sm:$0xff]
    %v819 = vld [vmem:[#allocation7 + $0x358] sm:$0xff]
    %v820 = vld [vmem:[#allocation7 + $0x360] sm:$0xff]
    %v821 = vld [vmem:[#allocation7 + $0x368] sm:$0xff]
    %v822 = vld [vmem:[#allocation7 + $0x370] sm:$0xff]
    %v823 = vld [vmem:[#allocation7 + $0x378] sm:$0xff]
    %v824 = vld [vmem:[#allocation7 + $0x380] sm:$0xff]
    %v825 = vld [vmem:[#allocation7 + $0x388] sm:$0xff]
    %v826 = vld [vmem:[#allocation7 + $0x390] sm:$0xff]
    %v827 = vld [vmem:[#allocation7 + $0x398] sm:$0xff]
    %v828 = vld [vmem:[#allocation7 + $0x3a0] sm:$0xff]
    %v829 = vld [vmem:[#allocation7 + $0x3a8] sm:$0xff]
    %v830 = vld [vmem:[#allocation7 + $0x3b0] sm:$0xff]
    %v831 = vld [vmem:[#allocation7 + $0x3b8] sm:$0xff]
    %v832 = vld [vmem:[#allocation7 + $0x3c0] sm:$0xff]
    %v833 = vld [vmem:[#allocation7 + $0x3c8] sm:$0xff]
    %v834 = vld [vmem:[#allocation7 + $0x3d0] sm:$0xff]
    %v835 = vld [vmem:[#allocation7 + $0x3d8] sm:$0xff]
    %v836 = vld [vmem:[#allocation7 + $0x3e0] sm:$0xff]
    %v837 = vld [vmem:[#allocation7 + $0x3e8] sm:$0xff]
    %v838 = vld [vmem:[#allocation7 + $0x3f0] sm:$0xff]
    %v839 = vld [vmem:[#allocation7 + $0x3f8] sm:$0xff]
    %v840 = vld [vmem:[#allocation7 + $0x400] sm:$0xff]
    %v841 = vld [vmem:[#allocation7 + $0x408] sm:$0xff]
    %v842 = vld [vmem:[#allocation7 + $0x410] sm:$0xff]
    %v843 = vld [vmem:[#allocation7 + $0x418] sm:$0xff]
    %v844 = vld [vmem:[#allocation7 + $0x420] sm:$0xff]
    %v845 = vld [vmem:[#allocation7 + $0x428] sm:$0xff]
    %v846 = vld [vmem:[#allocation7 + $0x430] sm:$0xff]
    %v847 = vld [vmem:[#allocation7 + $0x438] sm:$0xff]
    %v848 = vld [vmem:[#allocation7 + $0x440] sm:$0xff]
    %v849 = vld [vmem:[#allocation7 + $0x448] sm:$0xff]
    %v850 = vld [vmem:[#allocation7 + $0x450] sm:$0xff]
    %v851 = vld [vmem:[#allocation7 + $0x458] sm:$0xff]
    %v852 = vld [vmem:[#allocation7 + $0x460] sm:$0xff]
    %v853 = vld [vmem:[#allocation7 + $0x468] sm:$0xff]
    %v854 = vld [vmem:[#allocation7 + $0x470] sm:$0xff]
    %v855 = vld [vmem:[#allocation7 + $0x478] sm:$0xff]
    %v856 = vld [vmem:[#allocation7 + $0x480] sm:$0xff]
    %v857 = vld [vmem:[#allocation7 + $0x488] sm:$0xff]
    %v858 = vld [vmem:[#allocation7 + $0x490] sm:$0xff]
    %v859 = vld [vmem:[#allocation7 + $0x498] sm:$0xff]
    %v860 = vld [vmem:[#allocation7 + $0x4a0] sm:$0xff]
    %v861 = vld [vmem:[#allocation7 + $0x4a8] sm:$0xff]
    %v862 = vld [vmem:[#allocation7 + $0x4b0] sm:$0xff]
    %v863 = vld [vmem:[#allocation7 + $0x4b8] sm:$0xff]
    %v864 = vld [vmem:[#allocation7 + $0x4c0] sm:$0xff]
    %v865 = vld [vmem:[#allocation7 + $0x4c8] sm:$0xff]
    %v866 = vld [vmem:[#allocation7 + $0x4d0] sm:$0xff]
    %v867 = vld [vmem:[#allocation7 + $0x4d8] sm:$0xff]
    %v868 = vld [vmem:[#allocation7 + $0x4e0] sm:$0xff]
    %v869 = vld [vmem:[#allocation7 + $0x4e8] sm:$0xff]
    %v870 = vld [vmem:[#allocation7 + $0x4f0] sm:$0xff]
    %v871 = vld [vmem:[#allocation7 + $0x4f8] sm:$0xff]
    %v872 = vld [vmem:[#allocation7 + $0x500] sm:$0xff]
    %v873 = vld [vmem:[#allocation7 + $0x508] sm:$0xff]
    %v874 = vld [vmem:[#allocation7 + $0x510] sm:$0xff]
    %v875 = vld [vmem:[#allocation7 + $0x518] sm:$0xff]
    %v876 = vld [vmem:[#allocation7 + $0x520] sm:$0xff]
    %v877 = vld [vmem:[#allocation7 + $0x528] sm:$0xff]
    %v878 = vld [vmem:[#allocation7 + $0x530] sm:$0xff]
    %v879 = vld [vmem:[#allocation7 + $0x538] sm:$0xff]
    %v880 = vld [vmem:[#allocation7 + $0x540] sm:$0xff]
    %v881 = vld [vmem:[#allocation7 + $0x548] sm:$0xff]
    %v882 = vld [vmem:[#allocation7 + $0x550] sm:$0xff]
    %v883 = vld [vmem:[#allocation7 + $0x558] sm:$0xff]
    %v884 = vld [vmem:[#allocation7 + $0x560] sm:$0xff]
    %v885 = vld [vmem:[#allocation7 + $0x568] sm:$0xff]
    %v886 = vld [vmem:[#allocation7 + $0x570] sm:$0xff]
    %v887 = vld [vmem:[#allocation7 + $0x578] sm:$0xff]
    %v888 = vld [vmem:[#allocation7 + $0x580] sm:$0xff]
    %v889 = vld [vmem:[#allocation7 + $0x588] sm:$0xff]
    %v890 = vld [vmem:[#allocation7 + $0x590] sm:$0xff]
    %v891 = vld [vmem:[#allocation7 + $0x598] sm:$0xff]
    %v892 = vld [vmem:[#allocation7 + $0x5a0] sm:$0xff]
    %v893 = vld [vmem:[#allocation7 + $0x5a8] sm:$0xff]
    %v894 = vld [vmem:[#allocation7 + $0x5b0] sm:$0xff]
    %v895 = vld [vmem:[#allocation7 + $0x5b8] sm:$0xff]
    %v896 = vld [vmem:[#allocation7 + $0x5c0] sm:$0xff]
    %v897 = vld [vmem:[#allocation7 + $0x5c8] sm:$0xff]
    %v898 = vld [vmem:[#allocation7 + $0x5d0] sm:$0xff]
    %v899 = vld [vmem:[#allocation7 + $0x5d8] sm:$0xff]
    %v900 = vld [vmem:[#allocation7 + $0x5e0] sm:$0xff]
    %v901 = vld [vmem:[#allocation7 + $0x5e8] sm:$0xff]
    %v902 = vld [vmem:[#allocation7 + $0x5f0] sm:$0xff]
    %v903 = vld [vmem:[#allocation7 + $0x5f8] sm:$0xff]
    %v904 = vld [vmem:[#allocation7 + $0x600] sm:$0xff]
    %v905 = vld [vmem:[#allocation7 + $0x608] sm:$0xff]
    %v906 = vld [vmem:[#allocation7 + $0x610] sm:$0xff]
    %v907 = vld [vmem:[#allocation7 + $0x618] sm:$0xff]
    %v908 = vld [vmem:[#allocation7 + $0x620] sm:$0xff]
    %v909 = vld [vmem:[#allocation7 + $0x628] sm:$0xff]
    %v910 = vld [vmem:[#allocation7 + $0x630] sm:$0xff]
    %v911 = vld [vmem:[#allocation7 + $0x638] sm:$0xff]
    %v912 = vld [vmem:[#allocation7 + $0x640] sm:$0xff]
    %v913 = vld [vmem:[#allocation7 + $0x648] sm:$0xff]
    %v914 = vld [vmem:[#allocation7 + $0x650] sm:$0xff]
    %v915 = vld [vmem:[#allocation7 + $0x658] sm:$0xff]
    %v916 = vld [vmem:[#allocation7 + $0x660] sm:$0xff]
    %v917 = vld [vmem:[#allocation7 + $0x668] sm:$0xff]
    %v918 = vld [vmem:[#allocation7 + $0x670] sm:$0xff]
    %v919 = vld [vmem:[#allocation7 + $0x678] sm:$0xff]
    %v920 = vld [vmem:[#allocation7 + $0x680] sm:$0xff]
    %v921 = vld [vmem:[#allocation7 + $0x688] sm:$0xff]
    %v922 = vld [vmem:[#allocation7 + $0x690] sm:$0xff]
    %v923 = vld [vmem:[#allocation7 + $0x698] sm:$0xff]
    %v924 = vld [vmem:[#allocation7 + $0x6a0] sm:$0xff]
    %v925 = vld [vmem:[#allocation7 + $0x6a8] sm:$0xff]
    %v926 = vld [vmem:[#allocation7 + $0x6b0] sm:$0xff]
    %v927 = vld [vmem:[#allocation7 + $0x6b8] sm:$0xff]
    %v928 = vld [vmem:[#allocation7 + $0x6c0] sm:$0xff]
    %v929 = vld [vmem:[#allocation7 + $0x6c8] sm:$0xff]
    %v930 = vld [vmem:[#allocation7 + $0x6d0] sm:$0xff]
    %v931 = vld [vmem:[#allocation7 + $0x6d8] sm:$0xff]
    %v932 = vld [vmem:[#allocation7 + $0x6e0] sm:$0xff]
    %v933 = vld [vmem:[#allocation7 + $0x6e8] sm:$0xff]
    %v934 = vld [vmem:[#allocation7 + $0x6f0] sm:$0xff]
    %v935 = vld [vmem:[#allocation7 + $0x6f8] sm:$0xff]
    %v936 = vld [vmem:[#allocation7 + $0x700] sm:$0xff]
    %v937 = vld [vmem:[#allocation7 + $0x708] sm:$0xff]
    %v938 = vld [vmem:[#allocation7 + $0x710] sm:$0xff]
    %v939 = vld [vmem:[#allocation7 + $0x718] sm:$0xff]
    %v940 = vld [vmem:[#allocation7 + $0x720] sm:$0xff]
    %v941 = vld [vmem:[#allocation7 + $0x728] sm:$0xff]
    %v942 = vld [vmem:[#allocation7 + $0x730] sm:$0xff]
    %v943 = vld [vmem:[#allocation7 + $0x738] sm:$0xff]
    %v944 = vld [vmem:[#allocation7 + $0x740] sm:$0xff]
    %v945 = vld [vmem:[#allocation7 + $0x748] sm:$0xff]
    %v946 = vld [vmem:[#allocation7 + $0x750] sm:$0xff]
    %v947 = vld [vmem:[#allocation7 + $0x758] sm:$0xff]
    %v948 = vld [vmem:[#allocation7 + $0x760] sm:$0xff]
    %v949 = vld [vmem:[#allocation7 + $0x768] sm:$0xff]
    %v950 = vld [vmem:[#allocation7 + $0x770] sm:$0xff]
    %v951 = vld [vmem:[#allocation7 + $0x778] sm:$0xff]
    %v952 = vld [vmem:[#allocation7 + $0x780] sm:$0xff]
    %v953 = vld [vmem:[#allocation7 + $0x788] sm:$0xff]
    %v954 = vld [vmem:[#allocation7 + $0x790] sm:$0xff]
    %v955 = vld [vmem:[#allocation7 + $0x798] sm:$0xff]
    %v956 = vld [vmem:[#allocation7 + $0x7a0] sm:$0xff]
    %v957 = vld [vmem:[#allocation7 + $0x7a8] sm:$0xff]
    %v958 = vld [vmem:[#allocation7 + $0x7b0] sm:$0xff]
    %v959 = vld [vmem:[#allocation7 + $0x7b8] sm:$0xff]
    %v960 = vld [vmem:[#allocation7 + $0x7c0] sm:$0xff]
    %v961 = vld [vmem:[#allocation7 + $0x7c8] sm:$0xff]
    %v962 = vld [vmem:[#allocation7 + $0x7d0] sm:$0xff]
    %v963 = vld [vmem:[#allocation7 + $0x7d8] sm:$0xff]
    %v964 = vld [vmem:[#allocation7 + $0x7e0] sm:$0xff]
    %v965 = vld [vmem:[#allocation7 + $0x7e8] sm:$0xff]
    %v966 = vld [vmem:[#allocation7 + $0x7f0] sm:$0xff]
    %v967 = vld [vmem:[#allocation7 + $0x7f8] sm:$0xff]
    %v968 = vld [vmem:[%s4] sm:$0xf]
    %v970 = vlaneseq
    %v971 = vshrl.u32 %v970, 7
    %v972 = vsub.s32 0, %v971
    %v973 = vrot.slane %v968, %v972
    %v974 = vlaneseq
    %v975 = vshrl.u32 %v974, 7
    %v976 = vsub.s32 1, %v975
    %v977 = vrot.slane %v968, %v976
    %v978 = vlaneseq
    %v979 = vshrl.u32 %v978, 7
    %v980 = vsub.s32 2, %v979
    %v981 = vrot.slane %v968, %v980
    %v982 = vlaneseq
    %v983 = vshrl.u32 %v982, 7
    %v984 = vsub.s32 3, %v983
    %v985 = vrot.slane %v968, %v984
    %v1246 = vunpack.c.l.b16 %v712
    %v1247 = vunpack.c.h.b16 %v712
    %v1248 = vunpack.c.l.b16 %v713
    %v1249 = vunpack.c.h.b16 %v713
    %v1250 = vunpack.c.l.b16 %v714
    %v1251 = vunpack.c.h.b16 %v714
    %v1252 = vunpack.c.l.b16 %v715
    %v1253 = vunpack.c.h.b16 %v715
    %v1254 = vunpack.c.l.b16 %v716
    %v1255 = vunpack.c.h.b16 %v716
    %v1256 = vunpack.c.l.b16 %v717
    %v1257 = vunpack.c.h.b16 %v717
    %v1258 = vunpack.c.l.b16 %v718
    %v1259 = vunpack.c.h.b16 %v718
    %v1260 = vunpack.c.l.b16 %v719
    %v1261 = vunpack.c.h.b16 %v719
    %v1262 = vunpack.c.l.b16 %v720
    %v1263 = vunpack.c.h.b16 %v720
    %v1264 = vunpack.c.l.b16 %v721
    %v1265 = vunpack.c.h.b16 %v721
    %v1266 = vunpack.c.l.b16 %v722
    %v1267 = vunpack.c.h.b16 %v722
    %v1268 = vunpack.c.l.b16 %v723
    %v1269 = vunpack.c.h.b16 %v723
    %v1270 = vunpack.c.l.b16 %v724
    %v1271 = vunpack.c.h.b16 %v724
    %v1272 = vunpack.c.l.b16 %v725
    %v1273 = vunpack.c.h.b16 %v725
    %v1274 = vunpack.c.l.b16 %v726
    %v1275 = vunpack.c.h.b16 %v726
    %v1276 = vunpack.c.l.b16 %v727
    %v1277 = vunpack.c.h.b16 %v727
    %v1278 = vunpack.c.l.b16 %v728
    %v1279 = vunpack.c.h.b16 %v728
    %v1280 = vunpack.c.l.b16 %v729
    %v1281 = vunpack.c.h.b16 %v729
    %v1282 = vunpack.c.l.b16 %v730
    %v1283 = vunpack.c.h.b16 %v730
    %v1284 = vunpack.c.l.b16 %v731
    %v1285 = vunpack.c.h.b16 %v731
    %v1286 = vunpack.c.l.b16 %v732
    %v1287 = vunpack.c.h.b16 %v732
    %v1288 = vunpack.c.l.b16 %v733
    %v1289 = vunpack.c.h.b16 %v733
    %v1290 = vunpack.c.l.b16 %v734
    %v1291 = vunpack.c.h.b16 %v734
    %v1292 = vunpack.c.l.b16 %v735
    %v1293 = vunpack.c.h.b16 %v735
    %v1294 = vunpack.c.l.b16 %v736
    %v1295 = vunpack.c.h.b16 %v736
    %v1296 = vunpack.c.l.b16 %v737
    %v1297 = vunpack.c.h.b16 %v737
    %v1298 = vunpack.c.l.b16 %v738
    %v1299 = vunpack.c.h.b16 %v738
    %v1300 = vunpack.c.l.b16 %v739
    %v1301 = vunpack.c.h.b16 %v739
    %v1302 = vunpack.c.l.b16 %v740
    %v1303 = vunpack.c.h.b16 %v740
    %v1304 = vunpack.c.l.b16 %v741
    %v1305 = vunpack.c.h.b16 %v741
    %v1306 = vunpack.c.l.b16 %v742
    %v1307 = vunpack.c.h.b16 %v742
    %v1308 = vunpack.c.l.b16 %v743
    %v1309 = vunpack.c.h.b16 %v743
    %v1310 = vunpack.c.l.b16 %v744
    %v1311 = vunpack.c.h.b16 %v744
    %v1312 = vunpack.c.l.b16 %v745
    %v1313 = vunpack.c.h.b16 %v745
    %v1314 = vunpack.c.l.b16 %v746
    %v1315 = vunpack.c.h.b16 %v746
    %v1316 = vunpack.c.l.b16 %v747
    %v1317 = vunpack.c.h.b16 %v747
    %v1318 = vunpack.c.l.b16 %v748
    %v1319 = vunpack.c.h.b16 %v748
    %v1320 = vunpack.c.l.b16 %v749
    %v1321 = vunpack.c.h.b16 %v749
    %v1322 = vunpack.c.l.b16 %v750
    %v1323 = vunpack.c.h.b16 %v750
    %v1324 = vunpack.c.l.b16 %v751
    %v1325 = vunpack.c.h.b16 %v751
    %v1326 = vunpack.c.l.b16 %v752
    %v1327 = vunpack.c.h.b16 %v752
    %v1328 = vunpack.c.l.b16 %v753
    %v1329 = vunpack.c.h.b16 %v753
    %v1330 = vunpack.c.l.b16 %v754
    %v1331 = vunpack.c.h.b16 %v754
    %v1332 = vunpack.c.l.b16 %v755
    %v1333 = vunpack.c.h.b16 %v755
    %v1334 = vunpack.c.l.b16 %v756
    %v1335 = vunpack.c.h.b16 %v756
    %v1336 = vunpack.c.l.b16 %v757
    %v1337 = vunpack.c.h.b16 %v757
    %v1338 = vunpack.c.l.b16 %v758
    %v1339 = vunpack.c.h.b16 %v758
    %v1340 = vunpack.c.l.b16 %v759
    %v1341 = vunpack.c.h.b16 %v759
    %v1342 = vunpack.c.l.b16 %v760
    %v1343 = vunpack.c.h.b16 %v760
    %v1344 = vunpack.c.l.b16 %v761
    %v1345 = vunpack.c.h.b16 %v761
    %v1346 = vunpack.c.l.b16 %v762
    %v1347 = vunpack.c.h.b16 %v762
    %v1348 = vunpack.c.l.b16 %v763
    %v1349 = vunpack.c.h.b16 %v763
    %v1350 = vunpack.c.l.b16 %v764
    %v1351 = vunpack.c.h.b16 %v764
    %v1352 = vunpack.c.l.b16 %v765
    %v1353 = vunpack.c.h.b16 %v765
    %v1354 = vunpack.c.l.b16 %v766
    %v1355 = vunpack.c.h.b16 %v766
    %v1356 = vunpack.c.l.b16 %v767
    %v1357 = vunpack.c.h.b16 %v767
    %v1358 = vunpack.c.l.b16 %v768
    %v1359 = vunpack.c.h.b16 %v768
    %v1360 = vunpack.c.l.b16 %v769
    %v1361 = vunpack.c.h.b16 %v769
    %v1362 = vunpack.c.l.b16 %v770
    %v1363 = vunpack.c.h.b16 %v770
    %v1364 = vunpack.c.l.b16 %v771
    %v1365 = vunpack.c.h.b16 %v771
    %v1366 = vunpack.c.l.b16 %v772
    %v1367 = vunpack.c.h.b16 %v772
    %v1368 = vunpack.c.l.b16 %v773
    %v1369 = vunpack.c.h.b16 %v773
    %v1370 = vunpack.c.l.b16 %v774
    %v1371 = vunpack.c.h.b16 %v774
    %v1372 = vunpack.c.l.b16 %v775
    %v1373 = vunpack.c.h.b16 %v775
    %v1374 = vunpack.c.l.b16 %v776
    %v1375 = vunpack.c.h.b16 %v776
    %v1376 = vunpack.c.l.b16 %v777
    %v1377 = vunpack.c.h.b16 %v777
    %v1378 = vunpack.c.l.b16 %v778
    %v1379 = vunpack.c.h.b16 %v778
    %v1380 = vunpack.c.l.b16 %v779
    %v1381 = vunpack.c.h.b16 %v779
    %v1382 = vunpack.c.l.b16 %v780
    %v1383 = vunpack.c.h.b16 %v780
    %v1384 = vunpack.c.l.b16 %v781
    %v1385 = vunpack.c.h.b16 %v781
    %v1386 = vunpack.c.l.b16 %v782
    %v1387 = vunpack.c.h.b16 %v782
    %v1388 = vunpack.c.l.b16 %v783
    %v1389 = vunpack.c.h.b16 %v783
    %v1390 = vunpack.c.l.b16 %v784
    %v1391 = vunpack.c.h.b16 %v784
    %v1392 = vunpack.c.l.b16 %v785
    %v1393 = vunpack.c.h.b16 %v785
    %v1394 = vunpack.c.l.b16 %v786
    %v1395 = vunpack.c.h.b16 %v786
    %v1396 = vunpack.c.l.b16 %v787
    %v1397 = vunpack.c.h.b16 %v787
    %v1398 = vunpack.c.l.b16 %v788
    %v1399 = vunpack.c.h.b16 %v788
    %v1400 = vunpack.c.l.b16 %v789
    %v1401 = vunpack.c.h.b16 %v789
    %v1402 = vunpack.c.l.b16 %v790
    %v1403 = vunpack.c.h.b16 %v790
    %v1404 = vunpack.c.l.b16 %v791
    %v1405 = vunpack.c.h.b16 %v791
    %v1406 = vunpack.c.l.b16 %v792
    %v1407 = vunpack.c.h.b16 %v792
    %v1408 = vunpack.c.l.b16 %v793
    %v1409 = vunpack.c.h.b16 %v793
    %v1410 = vunpack.c.l.b16 %v794
    %v1411 = vunpack.c.h.b16 %v794
    %v1412 = vunpack.c.l.b16 %v795
    %v1413 = vunpack.c.h.b16 %v795
    %v1414 = vunpack.c.l.b16 %v796
    %v1415 = vunpack.c.h.b16 %v796
    %v1416 = vunpack.c.l.b16 %v797
    %v1417 = vunpack.c.h.b16 %v797
    %v1418 = vunpack.c.l.b16 %v798
    %v1419 = vunpack.c.h.b16 %v798
    %v1420 = vunpack.c.l.b16 %v799
    %v1421 = vunpack.c.h.b16 %v799
    %v1422 = vunpack.c.l.b16 %v800
    %v1423 = vunpack.c.h.b16 %v800
    %v1424 = vunpack.c.l.b16 %v801
    %v1425 = vunpack.c.h.b16 %v801
    %v1426 = vunpack.c.l.b16 %v802
    %v1427 = vunpack.c.h.b16 %v802
    %v1428 = vunpack.c.l.b16 %v803
    %v1429 = vunpack.c.h.b16 %v803
    %v1430 = vunpack.c.l.b16 %v804
    %v1431 = vunpack.c.h.b16 %v804
    %v1432 = vunpack.c.l.b16 %v805
    %v1433 = vunpack.c.h.b16 %v805
    %v1434 = vunpack.c.l.b16 %v806
    %v1435 = vunpack.c.h.b16 %v806
    %v1436 = vunpack.c.l.b16 %v807
    %v1437 = vunpack.c.h.b16 %v807
    %v1438 = vunpack.c.l.b16 %v808
    %v1439 = vunpack.c.h.b16 %v808
    %v1440 = vunpack.c.l.b16 %v809
    %v1441 = vunpack.c.h.b16 %v809
    %v1442 = vunpack.c.l.b16 %v810
    %v1443 = vunpack.c.h.b16 %v810
    %v1444 = vunpack.c.l.b16 %v811
    %v1445 = vunpack.c.h.b16 %v811
    %v1446 = vunpack.c.l.b16 %v812
    %v1447 = vunpack.c.h.b16 %v812
    %v1448 = vunpack.c.l.b16 %v813
    %v1449 = vunpack.c.h.b16 %v813
    %v1450 = vunpack.c.l.b16 %v814
    %v1451 = vunpack.c.h.b16 %v814
    %v1452 = vunpack.c.l.b16 %v815
    %v1453 = vunpack.c.h.b16 %v815
    %v1454 = vunpack.c.l.b16 %v816
    %v1455 = vunpack.c.h.b16 %v816
    %v1456 = vunpack.c.l.b16 %v817
    %v1457 = vunpack.c.h.b16 %v817
    %v1458 = vunpack.c.l.b16 %v818
    %v1459 = vunpack.c.h.b16 %v818
    %v1460 = vunpack.c.l.b16 %v819
    %v1461 = vunpack.c.h.b16 %v819
    %v1462 = vunpack.c.l.b16 %v820
    %v1463 = vunpack.c.h.b16 %v820
    %v1464 = vunpack.c.l.b16 %v821
    %v1465 = vunpack.c.h.b16 %v821
    %v1466 = vunpack.c.l.b16 %v822
    %v1467 = vunpack.c.h.b16 %v822
    %v1468 = vunpack.c.l.b16 %v823
    %v1469 = vunpack.c.h.b16 %v823
    %v1470 = vunpack.c.l.b16 %v824
    %v1471 = vunpack.c.h.b16 %v824
    %v1472 = vunpack.c.l.b16 %v825
    %v1473 = vunpack.c.h.b16 %v825
    %v1474 = vunpack.c.l.b16 %v826
    %v1475 = vunpack.c.h.b16 %v826
    %v1476 = vunpack.c.l.b16 %v827
    %v1477 = vunpack.c.h.b16 %v827
    %v1478 = vunpack.c.l.b16 %v828
    %v1479 = vunpack.c.h.b16 %v828
    %v1480 = vunpack.c.l.b16 %v829
    %v1481 = vunpack.c.h.b16 %v829
    %v1482 = vunpack.c.l.b16 %v830
    %v1483 = vunpack.c.h.b16 %v830
    %v1484 = vunpack.c.l.b16 %v831
    %v1485 = vunpack.c.h.b16 %v831
    %v1486 = vunpack.c.l.b16 %v832
    %v1487 = vunpack.c.h.b16 %v832
    %v1488 = vunpack.c.l.b16 %v833
    %v1489 = vunpack.c.h.b16 %v833
    %v1490 = vunpack.c.l.b16 %v834
    %v1491 = vunpack.c.h.b16 %v834
    %v1492 = vunpack.c.l.b16 %v835
    %v1493 = vunpack.c.h.b16 %v835
    %v1494 = vunpack.c.l.b16 %v836
    %v1495 = vunpack.c.h.b16 %v836
    %v1496 = vunpack.c.l.b16 %v837
    %v1497 = vunpack.c.h.b16 %v837
    %v1498 = vunpack.c.l.b16 %v838
    %v1499 = vunpack.c.h.b16 %v838
    %v1500 = vunpack.c.l.b16 %v839
    %v1501 = vunpack.c.h.b16 %v839
    %v1502 = vunpack.c.l.b16 %v840
    %v1503 = vunpack.c.h.b16 %v840
    %v1504 = vunpack.c.l.b16 %v841
    %v1505 = vunpack.c.h.b16 %v841
    %v1506 = vunpack.c.l.b16 %v842
    %v1507 = vunpack.c.h.b16 %v842
    %v1508 = vunpack.c.l.b16 %v843
    %v1509 = vunpack.c.h.b16 %v843
    %v1510 = vunpack.c.l.b16 %v844
    %v1511 = vunpack.c.h.b16 %v844
    %v1512 = vunpack.c.l.b16 %v845
    %v1513 = vunpack.c.h.b16 %v845
    %v1514 = vunpack.c.l.b16 %v846
    %v1515 = vunpack.c.h.b16 %v846
    %v1516 = vunpack.c.l.b16 %v847
    %v1517 = vunpack.c.h.b16 %v847
    %v1518 = vunpack.c.l.b16 %v848
    %v1519 = vunpack.c.h.b16 %v848
    %v1520 = vunpack.c.l.b16 %v849
    %v1521 = vunpack.c.h.b16 %v849
    %v1522 = vunpack.c.l.b16 %v850
    %v1523 = vunpack.c.h.b16 %v850
    %v1524 = vunpack.c.l.b16 %v851
    %v1525 = vunpack.c.h.b16 %v851
    %v1526 = vunpack.c.l.b16 %v852
    %v1527 = vunpack.c.h.b16 %v852
    %v1528 = vunpack.c.l.b16 %v853
    %v1529 = vunpack.c.h.b16 %v853
    %v1530 = vunpack.c.l.b16 %v854
    %v1531 = vunpack.c.h.b16 %v854
    %v1532 = vunpack.c.l.b16 %v855
    %v1533 = vunpack.c.h.b16 %v855
    %v1534 = vunpack.c.l.b16 %v856
    %v1535 = vunpack.c.h.b16 %v856
    %v1536 = vunpack.c.l.b16 %v857
    %v1537 = vunpack.c.h.b16 %v857
    %v1538 = vunpack.c.l.b16 %v858
    %v1539 = vunpack.c.h.b16 %v858
    %v1540 = vunpack.c.l.b16 %v859
    %v1541 = vunpack.c.h.b16 %v859
    %v1542 = vunpack.c.l.b16 %v860
    %v1543 = vunpack.c.h.b16 %v860
    %v1544 = vunpack.c.l.b16 %v861
    %v1545 = vunpack.c.h.b16 %v861
    %v1546 = vunpack.c.l.b16 %v862
    %v1547 = vunpack.c.h.b16 %v862
    %v1548 = vunpack.c.l.b16 %v863
    %v1549 = vunpack.c.h.b16 %v863
    %v1550 = vunpack.c.l.b16 %v864
    %v1551 = vunpack.c.h.b16 %v864
    %v1552 = vunpack.c.l.b16 %v865
    %v1553 = vunpack.c.h.b16 %v865
    %v1554 = vunpack.c.l.b16 %v866
    %v1555 = vunpack.c.h.b16 %v866
    %v1556 = vunpack.c.l.b16 %v867
    %v1557 = vunpack.c.h.b16 %v867
    %v1558 = vunpack.c.l.b16 %v868
    %v1559 = vunpack.c.h.b16 %v868
    %v1560 = vunpack.c.l.b16 %v869
    %v1561 = vunpack.c.h.b16 %v869
    %v1562 = vunpack.c.l.b16 %v870
    %v1563 = vunpack.c.h.b16 %v870
    %v1564 = vunpack.c.l.b16 %v871
    %v1565 = vunpack.c.h.b16 %v871
    %v1566 = vunpack.c.l.b16 %v872
    %v1567 = vunpack.c.h.b16 %v872
    %v1568 = vunpack.c.l.b16 %v873
    %v1569 = vunpack.c.h.b16 %v873
    %v1570 = vunpack.c.l.b16 %v874
    %v1571 = vunpack.c.h.b16 %v874
    %v1572 = vunpack.c.l.b16 %v875
    %v1573 = vunpack.c.h.b16 %v875
    %v1574 = vunpack.c.l.b16 %v876
    %v1575 = vunpack.c.h.b16 %v876
    %v1576 = vunpack.c.l.b16 %v877
    %v1577 = vunpack.c.h.b16 %v877
    %v1578 = vunpack.c.l.b16 %v878
    %v1579 = vunpack.c.h.b16 %v878
    %v1580 = vunpack.c.l.b16 %v879
    %v1581 = vunpack.c.h.b16 %v879
    %v1582 = vunpack.c.l.b16 %v880
    %v1583 = vunpack.c.h.b16 %v880
    %v1584 = vunpack.c.l.b16 %v881
    %v1585 = vunpack.c.h.b16 %v881
    %v1586 = vunpack.c.l.b16 %v882
    %v1587 = vunpack.c.h.b16 %v882
    %v1588 = vunpack.c.l.b16 %v883
    %v1589 = vunpack.c.h.b16 %v883
    %v1590 = vunpack.c.l.b16 %v884
    %v1591 = vunpack.c.h.b16 %v884
    %v1592 = vunpack.c.l.b16 %v885
    %v1593 = vunpack.c.h.b16 %v885
    %v1594 = vunpack.c.l.b16 %v886
    %v1595 = vunpack.c.h.b16 %v886
    %v1596 = vunpack.c.l.b16 %v887
    %v1597 = vunpack.c.h.b16 %v887
    %v1598 = vunpack.c.l.b16 %v888
    %v1599 = vunpack.c.h.b16 %v888
    %v1600 = vunpack.c.l.b16 %v889
    %v1601 = vunpack.c.h.b16 %v889
    %v1602 = vunpack.c.l.b16 %v890
    %v1603 = vunpack.c.h.b16 %v890
    %v1604 = vunpack.c.l.b16 %v891
    %v1605 = vunpack.c.h.b16 %v891
    %v1606 = vunpack.c.l.b16 %v892
    %v1607 = vunpack.c.h.b16 %v892
    %v1608 = vunpack.c.l.b16 %v893
    %v1609 = vunpack.c.h.b16 %v893
    %v1610 = vunpack.c.l.b16 %v894
    %v1611 = vunpack.c.h.b16 %v894
    %v1612 = vunpack.c.l.b16 %v895
    %v1613 = vunpack.c.h.b16 %v895
    %v1614 = vunpack.c.l.b16 %v896
    %v1615 = vunpack.c.h.b16 %v896
    %v1616 = vunpack.c.l.b16 %v897
    %v1617 = vunpack.c.h.b16 %v897
    %v1618 = vunpack.c.l.b16 %v898
    %v1619 = vunpack.c.h.b16 %v898
    %v1620 = vunpack.c.l.b16 %v899
    %v1621 = vunpack.c.h.b16 %v899
    %v1622 = vunpack.c.l.b16 %v900
    %v1623 = vunpack.c.h.b16 %v900
    %v1624 = vunpack.c.l.b16 %v901
    %v1625 = vunpack.c.h.b16 %v901
    %v1626 = vunpack.c.l.b16 %v902
    %v1627 = vunpack.c.h.b16 %v902
    %v1628 = vunpack.c.l.b16 %v903
    %v1629 = vunpack.c.h.b16 %v903
    %v1630 = vunpack.c.l.b16 %v904
    %v1631 = vunpack.c.h.b16 %v904
    %v1632 = vunpack.c.l.b16 %v905
    %v1633 = vunpack.c.h.b16 %v905
    %v1634 = vunpack.c.l.b16 %v906
    %v1635 = vunpack.c.h.b16 %v906
    %v1636 = vunpack.c.l.b16 %v907
    %v1637 = vunpack.c.h.b16 %v907
    %v1638 = vunpack.c.l.b16 %v908
    %v1639 = vunpack.c.h.b16 %v908
    %v1640 = vunpack.c.l.b16 %v909
    %v1641 = vunpack.c.h.b16 %v909
    %v1642 = vunpack.c.l.b16 %v910
    %v1643 = vunpack.c.h.b16 %v910
    %v1644 = vunpack.c.l.b16 %v911
    %v1645 = vunpack.c.h.b16 %v911
    %v1646 = vunpack.c.l.b16 %v912
    %v1647 = vunpack.c.h.b16 %v912
    %v1648 = vunpack.c.l.b16 %v913
    %v1649 = vunpack.c.h.b16 %v913
    %v1650 = vunpack.c.l.b16 %v914
    %v1651 = vunpack.c.h.b16 %v914
    %v1652 = vunpack.c.l.b16 %v915
    %v1653 = vunpack.c.h.b16 %v915
    %v1654 = vunpack.c.l.b16 %v916
    %v1655 = vunpack.c.h.b16 %v916
    %v1656 = vunpack.c.l.b16 %v917
    %v1657 = vunpack.c.h.b16 %v917
    %v1658 = vunpack.c.l.b16 %v918
    %v1659 = vunpack.c.h.b16 %v918
    %v1660 = vunpack.c.l.b16 %v919
    %v1661 = vunpack.c.h.b16 %v919
    %v1662 = vunpack.c.l.b16 %v920
    %v1663 = vunpack.c.h.b16 %v920
    %v1664 = vunpack.c.l.b16 %v921
    %v1665 = vunpack.c.h.b16 %v921
    %v1666 = vunpack.c.l.b16 %v922
    %v1667 = vunpack.c.h.b16 %v922
    %v1668 = vunpack.c.l.b16 %v923
    %v1669 = vunpack.c.h.b16 %v923
    %v1670 = vunpack.c.l.b16 %v924
    %v1671 = vunpack.c.h.b16 %v924
    %v1672 = vunpack.c.l.b16 %v925
    %v1673 = vunpack.c.h.b16 %v925
    %v1674 = vunpack.c.l.b16 %v926
    %v1675 = vunpack.c.h.b16 %v926
    %v1676 = vunpack.c.l.b16 %v927
    %v1677 = vunpack.c.h.b16 %v927
    %v1678 = vunpack.c.l.b16 %v928
    %v1679 = vunpack.c.h.b16 %v928
    %v1680 = vunpack.c.l.b16 %v929
    %v1681 = vunpack.c.h.b16 %v929
    %v1682 = vunpack.c.l.b16 %v930
    %v1683 = vunpack.c.h.b16 %v930
    %v1684 = vunpack.c.l.b16 %v931
    %v1685 = vunpack.c.h.b16 %v931
    %v1686 = vunpack.c.l.b16 %v932
    %v1687 = vunpack.c.h.b16 %v932
    %v1688 = vunpack.c.l.b16 %v933
    %v1689 = vunpack.c.h.b16 %v933
    %v1690 = vunpack.c.l.b16 %v934
    %v1691 = vunpack.c.h.b16 %v934
    %v1692 = vunpack.c.l.b16 %v935
    %v1693 = vunpack.c.h.b16 %v935
    %v1694 = vunpack.c.l.b16 %v936
    %v1695 = vunpack.c.h.b16 %v936
    %v1696 = vunpack.c.l.b16 %v937
    %v1697 = vunpack.c.h.b16 %v937
    %v1698 = vunpack.c.l.b16 %v938
    %v1699 = vunpack.c.h.b16 %v938
    %v1700 = vunpack.c.l.b16 %v939
    %v1701 = vunpack.c.h.b16 %v939
    %v1702 = vunpack.c.l.b16 %v940
    %v1703 = vunpack.c.h.b16 %v940
    %v1704 = vunpack.c.l.b16 %v941
    %v1705 = vunpack.c.h.b16 %v941
    %v1706 = vunpack.c.l.b16 %v942
    %v1707 = vunpack.c.h.b16 %v942
    %v1708 = vunpack.c.l.b16 %v943
    %v1709 = vunpack.c.h.b16 %v943
    %v1710 = vunpack.c.l.b16 %v944
    %v1711 = vunpack.c.h.b16 %v944
    %v1712 = vunpack.c.l.b16 %v945
    %v1713 = vunpack.c.h.b16 %v945
    %v1714 = vunpack.c.l.b16 %v946
    %v1715 = vunpack.c.h.b16 %v946
    %v1716 = vunpack.c.l.b16 %v947
    %v1717 = vunpack.c.h.b16 %v947
    %v1718 = vunpack.c.l.b16 %v948
    %v1719 = vunpack.c.h.b16 %v948
    %v1720 = vunpack.c.l.b16 %v949
    %v1721 = vunpack.c.h.b16 %v949
    %v1722 = vunpack.c.l.b16 %v950
    %v1723 = vunpack.c.h.b16 %v950
    %v1724 = vunpack.c.l.b16 %v951
    %v1725 = vunpack.c.h.b16 %v951
    %v1726 = vunpack.c.l.b16 %v952
    %v1727 = vunpack.c.h.b16 %v952
    %v1728 = vunpack.c.l.b16 %v953
    %v1729 = vunpack.c.h.b16 %v953
    %v1730 = vunpack.c.l.b16 %v954
    %v1731 = vunpack.c.h.b16 %v954
    %v1732 = vunpack.c.l.b16 %v955
    %v1733 = vunpack.c.h.b16 %v955
    %v1734 = vunpack.c.l.b16 %v956
    %v1735 = vunpack.c.h.b16 %v956
    %v1736 = vunpack.c.l.b16 %v957
    %v1737 = vunpack.c.h.b16 %v957
    %v1738 = vunpack.c.l.b16 %v958
    %v1739 = vunpack.c.h.b16 %v958
    %v1740 = vunpack.c.l.b16 %v959
    %v1741 = vunpack.c.h.b16 %v959
    %v1742 = vunpack.c.l.b16 %v960
    %v1743 = vunpack.c.h.b16 %v960
    %v1744 = vunpack.c.l.b16 %v961
    %v1745 = vunpack.c.h.b16 %v961
    %v1746 = vunpack.c.l.b16 %v962
    %v1747 = vunpack.c.h.b16 %v962
    %v1748 = vunpack.c.l.b16 %v963
    %v1749 = vunpack.c.h.b16 %v963
    %v1750 = vunpack.c.l.b16 %v964
    %v1751 = vunpack.c.h.b16 %v964
    %v1752 = vunpack.c.l.b16 %v965
    %v1753 = vunpack.c.h.b16 %v965
    %v1754 = vunpack.c.l.b16 %v966
    %v1755 = vunpack.c.h.b16 %v966
    %v1756 = vunpack.c.l.b16 %v967
    %v1757 = vunpack.c.h.b16 %v967
    %v1758 = vpack.c.b16 %v1250, %v1246
    %v1759 = vpack.c.b16 %v1251, %v1247
    %v1760 = vpack.c.b16 %v1252, %v1248
    %v1761 = vpack.c.b16 %v1253, %v1249
    %v1762 = vpack.c.b16 %v1258, %v1254
    %v1763 = vpack.c.b16 %v1259, %v1255
    %v1764 = vpack.c.b16 %v1260, %v1256
    %v1765 = vpack.c.b16 %v1261, %v1257
    %v1766 = vpack.c.b16 %v1266, %v1262
    %v1767 = vpack.c.b16 %v1267, %v1263
    %v1768 = vpack.c.b16 %v1268, %v1264
    %v1769 = vpack.c.b16 %v1269, %v1265
    %v1770 = vpack.c.b16 %v1274, %v1270
    %v1771 = vpack.c.b16 %v1275, %v1271
    %v1772 = vpack.c.b16 %v1276, %v1272
    %v1773 = vpack.c.b16 %v1277, %v1273
    %v1774 = vpack.c.b16 %v1282, %v1278
    %v1775 = vpack.c.b16 %v1283, %v1279
    %v1776 = vpack.c.b16 %v1284, %v1280
    %v1777 = vpack.c.b16 %v1285, %v1281
    %v1778 = vpack.c.b16 %v1290, %v1286
    %v1779 = vpack.c.b16 %v1291, %v1287
    %v1780 = vpack.c.b16 %v1292, %v1288
    %v1781 = vpack.c.b16 %v1293, %v1289
    %v1782 = vpack.c.b16 %v1298, %v1294
    %v1783 = vpack.c.b16 %v1299, %v1295
    %v1784 = vpack.c.b16 %v1300, %v1296
    %v1785 = vpack.c.b16 %v1301, %v1297
    %v1786 = vpack.c.b16 %v1306, %v1302
    %v1787 = vpack.c.b16 %v1307, %v1303
    %v1788 = vpack.c.b16 %v1308, %v1304
    %v1789 = vpack.c.b16 %v1309, %v1305
    %v1790 = vpack.c.b16 %v1314, %v1310
    %v1791 = vpack.c.b16 %v1315, %v1311
    %v1792 = vpack.c.b16 %v1316, %v1312
    %v1793 = vpack.c.b16 %v1317, %v1313
    %v1794 = vpack.c.b16 %v1322, %v1318
    %v1795 = vpack.c.b16 %v1323, %v1319
    %v1796 = vpack.c.b16 %v1324, %v1320
    %v1797 = vpack.c.b16 %v1325, %v1321
    %v1798 = vpack.c.b16 %v1330, %v1326
    %v1799 = vpack.c.b16 %v1331, %v1327
    %v1800 = vpack.c.b16 %v1332, %v1328
    %v1801 = vpack.c.b16 %v1333, %v1329
    %v1802 = vpack.c.b16 %v1338, %v1334
    %v1803 = vpack.c.b16 %v1339, %v1335
    %v1804 = vpack.c.b16 %v1340, %v1336
    %v1805 = vpack.c.b16 %v1341, %v1337
    %v1806 = vpack.c.b16 %v1346, %v1342
    %v1807 = vpack.c.b16 %v1347, %v1343
    %v1808 = vpack.c.b16 %v1348, %v1344
    %v1809 = vpack.c.b16 %v1349, %v1345
    %v1810 = vpack.c.b16 %v1354, %v1350
    %v1811 = vpack.c.b16 %v1355, %v1351
    %v1812 = vpack.c.b16 %v1356, %v1352
    %v1813 = vpack.c.b16 %v1357, %v1353
    %v1814 = vpack.c.b16 %v1362, %v1358
    %v1815 = vpack.c.b16 %v1363, %v1359
    %v1816 = vpack.c.b16 %v1364, %v1360
    %v1817 = vpack.c.b16 %v1365, %v1361
    %v1818 = vpack.c.b16 %v1370, %v1366
    %v1819 = vpack.c.b16 %v1371, %v1367
    %v1820 = vpack.c.b16 %v1372, %v1368
    %v1821 = vpack.c.b16 %v1373, %v1369
    %v1822 = vpack.c.b16 %v1378, %v1374
    %v1823 = vpack.c.b16 %v1379, %v1375
    %v1824 = vpack.c.b16 %v1380, %v1376
    %v1825 = vpack.c.b16 %v1381, %v1377
    %v1826 = vpack.c.b16 %v1386, %v1382
    %v1827 = vpack.c.b16 %v1387, %v1383
    %v1828 = vpack.c.b16 %v1388, %v1384
    %v1829 = vpack.c.b16 %v1389, %v1385
    %v1830 = vpack.c.b16 %v1394, %v1390
    %v1831 = vpack.c.b16 %v1395, %v1391
    %v1832 = vpack.c.b16 %v1396, %v1392
    %v1833 = vpack.c.b16 %v1397, %v1393
    %v1834 = vpack.c.b16 %v1402, %v1398
    %v1835 = vpack.c.b16 %v1403, %v1399
    %v1836 = vpack.c.b16 %v1404, %v1400
    %v1837 = vpack.c.b16 %v1405, %v1401
    %v1838 = vpack.c.b16 %v1410, %v1406
    %v1839 = vpack.c.b16 %v1411, %v1407
    %v1840 = vpack.c.b16 %v1412, %v1408
    %v1841 = vpack.c.b16 %v1413, %v1409
    %v1842 = vpack.c.b16 %v1418, %v1414
    %v1843 = vpack.c.b16 %v1419, %v1415
    %v1844 = vpack.c.b16 %v1420, %v1416
    %v1845 = vpack.c.b16 %v1421, %v1417
    %v1846 = vpack.c.b16 %v1426, %v1422
    %v1847 = vpack.c.b16 %v1427, %v1423
    %v1848 = vpack.c.b16 %v1428, %v1424
    %v1849 = vpack.c.b16 %v1429, %v1425
    %v1850 = vpack.c.b16 %v1434, %v1430
    %v1851 = vpack.c.b16 %v1435, %v1431
    %v1852 = vpack.c.b16 %v1436, %v1432
    %v1853 = vpack.c.b16 %v1437, %v1433
    %v1854 = vpack.c.b16 %v1442, %v1438
    %v1855 = vpack.c.b16 %v1443, %v1439
    %v1856 = vpack.c.b16 %v1444, %v1440
    %v1857 = vpack.c.b16 %v1445, %v1441
    %v1858 = vpack.c.b16 %v1450, %v1446
    %v1859 = vpack.c.b16 %v1451, %v1447
    %v1860 = vpack.c.b16 %v1452, %v1448
    %v1861 = vpack.c.b16 %v1453, %v1449
    %v1862 = vpack.c.b16 %v1458, %v1454
    %v1863 = vpack.c.b16 %v1459, %v1455
    %v1864 = vpack.c.b16 %v1460, %v1456
    %v1865 = vpack.c.b16 %v1461, %v1457
    %v1866 = vpack.c.b16 %v1466, %v1462
    %v1867 = vpack.c.b16 %v1467, %v1463
    %v1868 = vpack.c.b16 %v1468, %v1464
    %v1869 = vpack.c.b16 %v1469, %v1465
    %v1870 = vpack.c.b16 %v1474, %v1470
    %v1871 = vpack.c.b16 %v1475, %v1471
    %v1872 = vpack.c.b16 %v1476, %v1472
    %v1873 = vpack.c.b16 %v1477, %v1473
    %v1874 = vpack.c.b16 %v1482, %v1478
    %v1875 = vpack.c.b16 %v1483, %v1479
    %v1876 = vpack.c.b16 %v1484, %v1480
    %v1877 = vpack.c.b16 %v1485, %v1481
    %v1878 = vpack.c.b16 %v1490, %v1486
    %v1879 = vpack.c.b16 %v1491, %v1487
    %v1880 = vpack.c.b16 %v1492, %v1488
    %v1881 = vpack.c.b16 %v1493, %v1489
    %v1882 = vpack.c.b16 %v1498, %v1494
    %v1883 = vpack.c.b16 %v1499, %v1495
    %v1884 = vpack.c.b16 %v1500, %v1496
    %v1885 = vpack.c.b16 %v1501, %v1497
    %v1886 = vpack.c.b16 %v1506, %v1502
    %v1887 = vpack.c.b16 %v1507, %v1503
    %v1888 = vpack.c.b16 %v1508, %v1504
    %v1889 = vpack.c.b16 %v1509, %v1505
    %v1890 = vpack.c.b16 %v1514, %v1510
    %v1891 = vpack.c.b16 %v1515, %v1511
    %v1892 = vpack.c.b16 %v1516, %v1512
    %v1893 = vpack.c.b16 %v1517, %v1513
    %v1894 = vpack.c.b16 %v1522, %v1518
    %v1895 = vpack.c.b16 %v1523, %v1519
    %v1896 = vpack.c.b16 %v1524, %v1520
    %v1897 = vpack.c.b16 %v1525, %v1521
    %v1898 = vpack.c.b16 %v1530, %v1526
    %v1899 = vpack.c.b16 %v1531, %v1527
    %v1900 = vpack.c.b16 %v1532, %v1528
    %v1901 = vpack.c.b16 %v1533, %v1529
    %v1902 = vpack.c.b16 %v1538, %v1534
    %v1903 = vpack.c.b16 %v1539, %v1535
    %v1904 = vpack.c.b16 %v1540, %v1536
    %v1905 = vpack.c.b16 %v1541, %v1537
    %v1906 = vpack.c.b16 %v1546, %v1542
    %v1907 = vpack.c.b16 %v1547, %v1543
    %v1908 = vpack.c.b16 %v1548, %v1544
    %v1909 = vpack.c.b16 %v1549, %v1545
    %v1910 = vpack.c.b16 %v1554, %v1550
    %v1911 = vpack.c.b16 %v1555, %v1551
    %v1912 = vpack.c.b16 %v1556, %v1552
    %v1913 = vpack.c.b16 %v1557, %v1553
    %v1914 = vpack.c.b16 %v1562, %v1558
    %v1915 = vpack.c.b16 %v1563, %v1559
    %v1916 = vpack.c.b16 %v1564, %v1560
    %v1917 = vpack.c.b16 %v1565, %v1561
    %v1918 = vpack.c.b16 %v1570, %v1566
    %v1919 = vpack.c.b16 %v1571, %v1567
    %v1920 = vpack.c.b16 %v1572, %v1568
    %v1921 = vpack.c.b16 %v1573, %v1569
    %v1922 = vpack.c.b16 %v1578, %v1574
    %v1923 = vpack.c.b16 %v1579, %v1575
    %v1924 = vpack.c.b16 %v1580, %v1576
    %v1925 = vpack.c.b16 %v1581, %v1577
    %v1926 = vpack.c.b16 %v1586, %v1582
    %v1927 = vpack.c.b16 %v1587, %v1583
    %v1928 = vpack.c.b16 %v1588, %v1584
    %v1929 = vpack.c.b16 %v1589, %v1585
    %v1930 = vpack.c.b16 %v1594, %v1590
    %v1931 = vpack.c.b16 %v1595, %v1591
    %v1932 = vpack.c.b16 %v1596, %v1592
    %v1933 = vpack.c.b16 %v1597, %v1593
    %v1934 = vpack.c.b16 %v1602, %v1598
    %v1935 = vpack.c.b16 %v1603, %v1599
    %v1936 = vpack.c.b16 %v1604, %v1600
    %v1937 = vpack.c.b16 %v1605, %v1601
    %v1938 = vpack.c.b16 %v1610, %v1606
    %v1939 = vpack.c.b16 %v1611, %v1607
    %v1940 = vpack.c.b16 %v1612, %v1608
    %v1941 = vpack.c.b16 %v1613, %v1609
    %v1942 = vpack.c.b16 %v1618, %v1614
    %v1943 = vpack.c.b16 %v1619, %v1615
    %v1944 = vpack.c.b16 %v1620, %v1616
    %v1945 = vpack.c.b16 %v1621, %v1617
    %v1946 = vpack.c.b16 %v1626, %v1622
    %v1947 = vpack.c.b16 %v1627, %v1623
    %v1948 = vpack.c.b16 %v1628, %v1624
    %v1949 = vpack.c.b16 %v1629, %v1625
    %v1950 = vpack.c.b16 %v1634, %v1630
    %v1951 = vpack.c.b16 %v1635, %v1631
    %v1952 = vpack.c.b16 %v1636, %v1632
    %v1953 = vpack.c.b16 %v1637, %v1633
    %v1954 = vpack.c.b16 %v1642, %v1638
    %v1955 = vpack.c.b16 %v1643, %v1639
    %v1956 = vpack.c.b16 %v1644, %v1640
    %v1957 = vpack.c.b16 %v1645, %v1641
    %v1958 = vpack.c.b16 %v1650, %v1646
    %v1959 = vpack.c.b16 %v1651, %v1647
    %v1960 = vpack.c.b16 %v1652, %v1648
    %v1961 = vpack.c.b16 %v1653, %v1649
    %v1962 = vpack.c.b16 %v1658, %v1654
    %v1963 = vpack.c.b16 %v1659, %v1655
    %v1964 = vpack.c.b16 %v1660, %v1656
    %v1965 = vpack.c.b16 %v1661, %v1657
    %v1966 = vpack.c.b16 %v1666, %v1662
    %v1967 = vpack.c.b16 %v1667, %v1663
    %v1968 = vpack.c.b16 %v1668, %v1664
    %v1969 = vpack.c.b16 %v1669, %v1665
    %v1970 = vpack.c.b16 %v1674, %v1670
    %v1971 = vpack.c.b16 %v1675, %v1671
    %v1972 = vpack.c.b16 %v1676, %v1672
    %v1973 = vpack.c.b16 %v1677, %v1673
    %v1974 = vpack.c.b16 %v1682, %v1678
    %v1975 = vpack.c.b16 %v1683, %v1679
    %v1976 = vpack.c.b16 %v1684, %v1680
    %v1977 = vpack.c.b16 %v1685, %v1681
    %v1978 = vpack.c.b16 %v1690, %v1686
    %v1979 = vpack.c.b16 %v1691, %v1687
    %v1980 = vpack.c.b16 %v1692, %v1688
    %v1981 = vpack.c.b16 %v1693, %v1689
    %v1982 = vpack.c.b16 %v1698, %v1694
    %v1983 = vpack.c.b16 %v1699, %v1695
    %v1984 = vpack.c.b16 %v1700, %v1696
    %v1985 = vpack.c.b16 %v1701, %v1697
    %v1986 = vpack.c.b16 %v1706, %v1702
    %v1987 = vpack.c.b16 %v1707, %v1703
    %v1988 = vpack.c.b16 %v1708, %v1704
    %v1989 = vpack.c.b16 %v1709, %v1705
    %v1990 = vpack.c.b16 %v1714, %v1710
    %v1991 = vpack.c.b16 %v1715, %v1711
    %v1992 = vpack.c.b16 %v1716, %v1712
    %v1993 = vpack.c.b16 %v1717, %v1713
    %v1994 = vpack.c.b16 %v1722, %v1718
    %v1995 = vpack.c.b16 %v1723, %v1719
    %v1996 = vpack.c.b16 %v1724, %v1720
    %v1997 = vpack.c.b16 %v1725, %v1721
    %v1998 = vpack.c.b16 %v1730, %v1726
    %v1999 = vpack.c.b16 %v1731, %v1727
    %v2000 = vpack.c.b16 %v1732, %v1728
    %v2001 = vpack.c.b16 %v1733, %v1729
    %v2002 = vpack.c.b16 %v1738, %v1734
    %v2003 = vpack.c.b16 %v1739, %v1735
    %v2004 = vpack.c.b16 %v1740, %v1736
    %v2005 = vpack.c.b16 %v1741, %v1737
    %v2006 = vpack.c.b16 %v1746, %v1742
    %v2007 = vpack.c.b16 %v1747, %v1743
    %v2008 = vpack.c.b16 %v1748, %v1744
    %v2009 = vpack.c.b16 %v1749, %v1745
    %v2010 = vpack.c.b16 %v1754, %v1750
    %v2011 = vpack.c.b16 %v1755, %v1751
    %v2012 = vpack.c.b16 %v1756, %v1752
    %v2013 = vpack.c.b16 %v1757, %v1753
    %2270 = vmatprep.subr.bf16.mxu0 %v1759
    %2271 = vmatpush1.bf16.msra.mxu0 %v1758
    %2272 = vmatprep.subr.bf16.mxu0 %v1763
    %2273 = vmatpush1.bf16.msra.mxu0 %v1762
    %2274 = vmatprep.subr.bf16.mxu0 %v1767
    %2275 = vmatpush1.bf16.msra.mxu0 %v1766
    %2276 = vmatprep.subr.bf16.mxu0 %v1771
    %2277 = vmatpush1.bf16.msra.mxu0 %v1770
    %2278 = vmatprep.subr.bf16.mxu0 %v1775
    %2279 = vmatpush1.bf16.msra.mxu0 %v1774
    %2280 = vmatprep.subr.bf16.mxu0 %v1779
    %2281 = vmatpush1.bf16.msra.mxu0 %v1778
    %2282 = vmatprep.subr.bf16.mxu0 %v1783
    %2283 = vmatpush1.bf16.msra.mxu0 %v1782
    %2284 = vmatprep.subr.bf16.mxu0 %v1787
    %2285 = vmatpush1.bf16.msra.mxu0 %v1786
    %2286 = vmatprep.subr.bf16.mxu0 %v1791
    %2287 = vmatpush1.bf16.msra.mxu0 %v1790
    %2288 = vmatprep.subr.bf16.mxu0 %v1795
    %2289 = vmatpush1.bf16.msra.mxu0 %v1794
    %2290 = vmatprep.subr.bf16.mxu0 %v1799
    %2291 = vmatpush1.bf16.msra.mxu0 %v1798
    %2292 = vmatprep.subr.bf16.mxu0 %v1803
    %2293 = vmatpush1.bf16.msra.mxu0 %v1802
    %2294 = vmatprep.subr.bf16.mxu0 %v1807
    %2295 = vmatpush1.bf16.msra.mxu0 %v1806
    %2296 = vmatprep.subr.bf16.mxu0 %v1811
    %2297 = vmatpush1.bf16.msra.mxu0 %v1810
    %2298 = vmatprep.subr.bf16.mxu0 %v1815
    %2299 = vmatpush1.bf16.msra.mxu0 %v1814
    %2300 = vmatprep.subr.bf16.mxu0 %v1819
    %2301 = vmatpush1.bf16.msra.mxu0 %v1818
    %2302 = vmatprep.mubr.bf16.mxu0 %v705
    %2303 = vmatmul.mubr.bf16.gmra.mrb[0].mxu0 %v704
    %v2304 = vpop.f32.mrb[0].mxu0
    %v2305 = vadd.f32 %v973, %v2304
    %v2306 = vpop.f32.mrb[0].mxu0
    %v2307 = vadd.f32 %v977, %v2306
    %v2308 = vpop.f32.mrb[0].mxu0
    %v2309 = vpop.f32.mrb[0].mxu0
    %2310 = vdwg.mxu0
    %2311 = vmatprep.subr.bf16.mxu0 %v1823
    %2312 = vmatpush1.bf16.msra.mxu0 %v1822
    %2313 = vmatprep.subr.bf16.mxu0 %v1827
    %2314 = vmatpush1.bf16.msra.mxu0 %v1826
    %2315 = vmatprep.subr.bf16.mxu0 %v1831
    %2316 = vmatpush1.bf16.msra.mxu0 %v1830
    %2317 = vmatprep.subr.bf16.mxu0 %v1835
    %2318 = vmatpush1.bf16.msra.mxu0 %v1834
    %2319 = vmatprep.subr.bf16.mxu0 %v1839
    %2320 = vmatpush1.bf16.msra.mxu0 %v1838
    %2321 = vmatprep.subr.bf16.mxu0 %v1843
    %2322 = vmatpush1.bf16.msra.mxu0 %v1842
    %2323 = vmatprep.subr.bf16.mxu0 %v1847
    %2324 = vmatpush1.bf16.msra.mxu0 %v1846
    %2325 = vmatprep.subr.bf16.mxu0 %v1851
    %2326 = vmatpush1.bf16.msra.mxu0 %v1850
    %2327 = vmatprep.subr.bf16.mxu0 %v1855
    %2328 = vmatpush1.bf16.msra.mxu0 %v1854
    %2329 = vmatprep.subr.bf16.mxu0 %v1859
    %2330 = vmatpush1.bf16.msra.mxu0 %v1858
    %2331 = vmatprep.subr.bf16.mxu0 %v1863
    %2332 = vmatpush1.bf16.msra.mxu0 %v1862
    %2333 = vmatprep.subr.bf16.mxu0 %v1867
    %2334 = vmatpush1.bf16.msra.mxu0 %v1866
    %2335 = vmatprep.subr.bf16.mxu0 %v1871
    %2336 = vmatpush1.bf16.msra.mxu0 %v1870
    %2337 = vmatprep.subr.bf16.mxu0 %v1875
    %2338 = vmatpush1.bf16.msra.mxu0 %v1874
    %2339 = vmatprep.subr.bf16.mxu0 %v1879
    %2340 = vmatpush1.bf16.msra.mxu0 %v1878
    %2341 = vmatprep.subr.bf16.mxu0 %v1883
    %2342 = vmatpush1.bf16.msra.mxu0 %v1882
    %2343 = vmatprep.mubr.bf16.mxu0 %v707
    %2344 = vmatmul.mubr.bf16.gmra.mrb[0].mxu0 %v706
    %v2345 = vpop.f32.mrb[0].mxu0
    %v2346 = vadd.f32 %v2305, %v2345
    %v2347 = vpop.f32.mrb[0].mxu0
    %v2348 = vadd.f32 %v2307, %v2347
    %v2349 = vpop.f32.mrb[0].mxu0
    %v2350 = vpop.f32.mrb[0].mxu0
    %2351 = vdwg.mxu0
    %2352 = vmatprep.subr.bf16.mxu0 %v1887
    %2353 = vmatpush1.bf16.msra.mxu0 %v1886
    %2354 = vmatprep.subr.bf16.mxu0 %v1891
    %2355 = vmatpush1.bf16.msra.mxu0 %v1890
    %2356 = vmatprep.subr.bf16.mxu0 %v1895
    %2357 = vmatpush1.bf16.msra.mxu0 %v1894
    %2358 = vmatprep.subr.bf16.mxu0 %v1899
    %2359 = vmatpush1.bf16.msra.mxu0 %v1898
    %2360 = vmatprep.subr.bf16.mxu0 %v1903
    %2361 = vmatpush1.bf16.msra.mxu0 %v1902
    %2362 = vmatprep.subr.bf16.mxu0 %v1907
    %2363 = vmatpush1.bf16.msra.mxu0 %v1906
    %2364 = vmatprep.subr.bf16.mxu0 %v1911
    %2365 = vmatpush1.bf16.msra.mxu0 %v1910
    %2366 = vmatprep.subr.bf16.mxu0 %v1915
    %2367 = vmatpush1.bf16.msra.mxu0 %v1914
    %2368 = vmatprep.subr.bf16.mxu0 %v1919
    %2369 = vmatpush1.bf16.msra.mxu0 %v1918
    %2370 = vmatprep.subr.bf16.mxu0 %v1923
    %2371 = vmatpush1.bf16.msra.mxu0 %v1922
    %2372 = vmatprep.subr.bf16.mxu0 %v1927
    %2373 = vmatpush1.bf16.msra.mxu0 %v1926
    %2374 = vmatprep.subr.bf16.mxu0 %v1931
    %2375 = vmatpush1.bf16.msra.mxu0 %v1930
    %2376 = vmatprep.subr.bf16.mxu0 %v1935
    %2377 = vmatpush1.bf16.msra.mxu0 %v1934
    %2378 = vmatprep.subr.bf16.mxu0 %v1939
    %2379 = vmatpush1.bf16.msra.mxu0 %v1938
    %2380 = vmatprep.subr.bf16.mxu0 %v1943
    %2381 = vmatpush1.bf16.msra.mxu0 %v1942
    %2382 = vmatprep.subr.bf16.mxu0 %v1947
    %2383 = vmatpush1.bf16.msra.mxu0 %v1946
    %2384 = vmatprep.mubr.bf16.mxu0 %v709
    %2385 = vmatmul.mubr.bf16.gmra.mrb[0].mxu0 %v708
    %v2386 = vpop.f32.mrb[0].mxu0
    %v2387 = vadd.f32 %v2346, %v2386
    %v2388 = vpop.f32.mrb[0].mxu0
    %v2389 = vadd.f32 %v2348, %v2388
    %v2390 = vpop.f32.mrb[0].mxu0
    %v2391 = vpop.f32.mrb[0].mxu0
    %2392 = vdwg.mxu0
    %2393 = vmatprep.subr.bf16.mxu0 %v1951
    %2394 = vmatpush1.bf16.msra.mxu0 %v1950
    %2395 = vmatprep.subr.bf16.mxu0 %v1955
    %2396 = vmatpush1.bf16.msra.mxu0 %v1954
    %2397 = vmatprep.subr.bf16.mxu0 %v1959
    %2398 = vmatpush1.bf16.msra.mxu0 %v1958
    %2399 = vmatprep.subr.bf16.mxu0 %v1963
    %2400 = vmatpush1.bf16.msra.mxu0 %v1962
    %2401 = vmatprep.subr.bf16.mxu0 %v1967
    %2402 = vmatpush1.bf16.msra.mxu0 %v1966
    %2403 = vmatprep.subr.bf16.mxu0 %v1971
    %2404 = vmatpush1.bf16.msra.mxu0 %v1970
    %2405 = vmatprep.subr.bf16.mxu0 %v1975
    %2406 = vmatpush1.bf16.msra.mxu0 %v1974
    %2407 = vmatprep.subr.bf16.mxu0 %v1979
    %2408 = vmatpush1.bf16.msra.mxu0 %v1978
    %2409 = vmatprep.subr.bf16.mxu0 %v1983
    %2410 = vmatpush1.bf16.msra.mxu0 %v1982
    %2411 = vmatprep.subr.bf16.mxu0 %v1987
    %2412 = vmatpush1.bf16.msra.mxu0 %v1986
    %2413 = vmatprep.subr.bf16.mxu0 %v1991
    %2414 = vmatpush1.bf16.msra.mxu0 %v1990
    %2415 = vmatprep.subr.bf16.mxu0 %v1995
    %2416 = vmatpush1.bf16.msra.mxu0 %v1994
    %2417 = vmatprep.subr.bf16.mxu0 %v1999
    %2418 = vmatpush1.bf16.msra.mxu0 %v1998
    %2419 = vmatprep.subr.bf16.mxu0 %v2003
    %2420 = vmatpush1.bf16.msra.mxu0 %v2002
    %2421 = vmatprep.subr.bf16.mxu0 %v2007
    %2422 = vmatpush1.bf16.msra.mxu0 %v2006
    %2423 = vmatprep.subr.bf16.mxu0 %v2011
    %2424 = vmatpush1.bf16.msra.mxu0 %v2010
    %2425 = vmatprep.mubr.bf16.mxu0 %v711
    %2426 = vmatmul.mubr.bf16.gmra.mrb[0].mxu0 %v710
    %v2427 = vpop.f32.mrb[0].mxu0
    %v2428 = vadd.f32 %v2387, %v2427
    %v2429 = vpop.f32.mrb[0].mxu0
    %v2430 = vadd.f32 %v2389, %v2429
    %v2431 = vpop.f32.mrb[0].mxu0
    %v2432 = vpop.f32.mrb[0].mxu0
    %2433 = vdwg.mxu0
    %2434 = vmatprep.subr.bf16.mxu0 %v1761
    %2435 = vmatpush1.bf16.msra.mxu0 %v1760
    %2436 = vmatprep.subr.bf16.mxu0 %v1765
    %2437 = vmatpush1.bf16.msra.mxu0 %v1764
    %2438 = vmatprep.subr.bf16.mxu0 %v1769
    %2439 = vmatpush1.bf16.msra.mxu0 %v1768
    %2440 = vmatprep.subr.bf16.mxu0 %v1773
    %2441 = vmatpush1.bf16.msra.mxu0 %v1772
    %2442 = vmatprep.subr.bf16.mxu0 %v1777
    %2443 = vmatpush1.bf16.msra.mxu0 %v1776
    %2444 = vmatprep.subr.bf16.mxu0 %v1781
    %2445 = vmatpush1.bf16.msra.mxu0 %v1780
    %2446 = vmatprep.subr.bf16.mxu0 %v1785
    %2447 = vmatpush1.bf16.msra.mxu0 %v1784
    %2448 = vmatprep.subr.bf16.mxu0 %v1789
    %2449 = vmatpush1.bf16.msra.mxu0 %v1788
    %2450 = vmatprep.subr.bf16.mxu0 %v1793
    %2451 = vmatpush1.bf16.msra.mxu0 %v1792
    %2452 = vmatprep.subr.bf16.mxu0 %v1797
    %2453 = vmatpush1.bf16.msra.mxu0 %v1796
    %2454 = vmatprep.subr.bf16.mxu0 %v1801
    %2455 = vmatpush1.bf16.msra.mxu0 %v1800
    %2456 = vmatprep.subr.bf16.mxu0 %v1805
    %2457 = vmatpush1.bf16.msra.mxu0 %v1804
    %2458 = vmatprep.subr.bf16.mxu0 %v1809
    %2459 = vmatpush1.bf16.msra.mxu0 %v1808
    %2460 = vmatprep.subr.bf16.mxu0 %v1813
    %2461 = vmatpush1.bf16.msra.mxu0 %v1812
    %2462 = vmatprep.subr.bf16.mxu0 %v1817
    %2463 = vmatpush1.bf16.msra.mxu0 %v1816
    %2464 = vmatprep.subr.bf16.mxu0 %v1821
    %2465 = vmatpush1.bf16.msra.mxu0 %v1820
    %2466 = vmatprep.mubr.bf16.mxu0 %v705
    %2467 = vmatmul.mubr.bf16.gmra.mrb[0].mxu0 %v704
    %v2468 = vpop.f32.mrb[0].mxu0
    %v2469 = vadd.f32 %v981, %v2468
    %v2470 = vpop.f32.mrb[0].mxu0
    %v2471 = vadd.f32 %v985, %v2470
    %v2472 = vpop.f32.mrb[0].mxu0
    %v2473 = vpop.f32.mrb[0].mxu0
    %2474 = vdwg.mxu0
    %2475 = vmatprep.subr.bf16.mxu0 %v1825
    %2476 = vmatpush1.bf16.msra.mxu0 %v1824
    %2477 = vmatprep.subr.bf16.mxu0 %v1829
    %2478 = vmatpush1.bf16.msra.mxu0 %v1828
    %2479 = vmatprep.subr.bf16.mxu0 %v1833
    %2480 = vmatpush1.bf16.msra.mxu0 %v1832
    %2481 = vmatprep.subr.bf16.mxu0 %v1837
    %2482 = vmatpush1.bf16.msra.mxu0 %v1836
    %2483 = vmatprep.subr.bf16.mxu0 %v1841
    %2484 = vmatpush1.bf16.msra.mxu0 %v1840
    %2485 = vmatprep.subr.bf16.mxu0 %v1845
    %2486 = vmatpush1.bf16.msra.mxu0 %v1844
    %2487 = vmatprep.subr.bf16.mxu0 %v1849
    %2488 = vmatpush1.bf16.msra.mxu0 %v1848
    %2489 = vmatprep.subr.bf16.mxu0 %v1853
    %2490 = vmatpush1.bf16.msra.mxu0 %v1852
    %2491 = vmatprep.subr.bf16.mxu0 %v1857
    %2492 = vmatpush1.bf16.msra.mxu0 %v1856
    %2493 = vmatprep.subr.bf16.mxu0 %v1861
    %2494 = vmatpush1.bf16.msra.mxu0 %v1860
    %2495 = vmatprep.subr.bf16.mxu0 %v1865
    %2496 = vmatpush1.bf16.msra.mxu0 %v1864
    %2497 = vmatprep.subr.bf16.mxu0 %v1869
    %2498 = vmatpush1.bf16.msra.mxu0 %v1868
    %2499 = vmatprep.subr.bf16.mxu0 %v1873
    %2500 = vmatpush1.bf16.msra.mxu0 %v1872
    %2501 = vmatprep.subr.bf16.mxu0 %v1877
    %2502 = vmatpush1.bf16.msra.mxu0 %v1876
    %2503 = vmatprep.subr.bf16.mxu0 %v1881
    %2504 = vmatpush1.bf16.msra.mxu0 %v1880
    %2505 = vmatprep.subr.bf16.mxu0 %v1885
    %2506 = vmatpush1.bf16.msra.mxu0 %v1884
    %2507 = vmatprep.mubr.bf16.mxu0 %v707
    %2508 = vmatmul.mubr.bf16.gmra.mrb[0].mxu0 %v706
    %v2509 = vpop.f32.mrb[0].mxu0
    %v2510 = vadd.f32 %v2469, %v2509
    %v2511 = vpop.f32.mrb[0].mxu0
    %v2512 = vadd.f32 %v2471, %v2511
    %v2513 = vpop.f32.mrb[0].mxu0
    %v2514 = vpop.f32.mrb[0].mxu0
    %2515 = vdwg.mxu0
    %2516 = vmatprep.subr.bf16.mxu0 %v1889
    %2517 = vmatpush1.bf16.msra.mxu0 %v1888
    %2518 = vmatprep.subr.bf16.mxu0 %v1893
    %2519 = vmatpush1.bf16.msra.mxu0 %v1892
    %2520 = vmatprep.subr.bf16.mxu0 %v1897
    %2521 = vmatpush1.bf16.msra.mxu0 %v1896
    %2522 = vmatprep.subr.bf16.mxu0 %v1901
    %2523 = vmatpush1.bf16.msra.mxu0 %v1900
    %2524 = vmatprep.subr.bf16.mxu0 %v1905
    %2525 = vmatpush1.bf16.msra.mxu0 %v1904
    %2526 = vmatprep.subr.bf16.mxu0 %v1909
    %2527 = vmatpush1.bf16.msra.mxu0 %v1908
    %2528 = vmatprep.subr.bf16.mxu0 %v1913
    %2529 = vmatpush1.bf16.msra.mxu0 %v1912
    %2530 = vmatprep.subr.bf16.mxu0 %v1917
    %2531 = vmatpush1.bf16.msra.mxu0 %v1916
    %2532 = vmatprep.subr.bf16.mxu0 %v1921
    %2533 = vmatpush1.bf16.msra.mxu0 %v1920
    %2534 = vmatprep.subr.bf16.mxu0 %v1925
    %2535 = vmatpush1.bf16.msra.mxu0 %v1924
    %2536 = vmatprep.subr.bf16.mxu0 %v1929
    %2537 = vmatpush1.bf16.msra.mxu0 %v1928
    %2538 = vmatprep.subr.bf16.mxu0 %v1933
    %2539 = vmatpush1.bf16.msra.mxu0 %v1932
    %2540 = vmatprep.subr.bf16.mxu0 %v1937
    %2541 = vmatpush1.bf16.msra.mxu0 %v1936
    %2542 = vmatprep.subr.bf16.mxu0 %v1941
    %2543 = vmatpush1.bf16.msra.mxu0 %v1940
    %2544 = vmatprep.subr.bf16.mxu0 %v1945
    %2545 = vmatpush1.bf16.msra.mxu0 %v1944
    %2546 = vmatprep.subr.bf16.mxu0 %v1949
    %2547 = vmatpush1.bf16.msra.mxu0 %v1948
    %2548 = vmatprep.mubr.bf16.mxu0 %v709
    %2549 = vmatmul.mubr.bf16.gmra.mrb[0].mxu0 %v708
    %v2550 = vpop.f32.mrb[0].mxu0
    %v2551 = vadd.f32 %v2510, %v2550
    %v2552 = vpop.f32.mrb[0].mxu0
    %v2553 = vadd.f32 %v2512, %v2552
    %v2554 = vpop.f32.mrb[0].mxu0
    %v2555 = vpop.f32.mrb[0].mxu0
    %2556 = vdwg.mxu0
    %2557 = vmatprep.subr.bf16.mxu0 %v1953
    %2558 = vmatpush1.bf16.msra.mxu0 %v1952
    %2559 = vmatprep.subr.bf16.mxu0 %v1957
    %2560 = vmatpush1.bf16.msra.mxu0 %v1956
    %2561 = vmatprep.subr.bf16.mxu0 %v1961
    %2562 = vmatpush1.bf16.msra.mxu0 %v1960
    %2563 = vmatprep.subr.bf16.mxu0 %v1965
    %2564 = vmatpush1.bf16.msra.mxu0 %v1964
    %2565 = vmatprep.subr.bf16.mxu0 %v1969
    %2566 = vmatpush1.bf16.msra.mxu0 %v1968
    %2567 = vmatprep.subr.bf16.mxu0 %v1973
    %2568 = vmatpush1.bf16.msra.mxu0 %v1972
    %2569 = vmatprep.subr.bf16.mxu0 %v1977
    %2570 = vmatpush1.bf16.msra.mxu0 %v1976
    %2571 = vmatprep.subr.bf16.mxu0 %v1981
    %2572 = vmatpush1.bf16.msra.mxu0 %v1980
    %2573 = vmatprep.subr.bf16.mxu0 %v1985
    %2574 = vmatpush1.bf16.msra.mxu0 %v1984
    %2575 = vmatprep.subr.bf16.mxu0 %v1989
    %2576 = vmatpush1.bf16.msra.mxu0 %v1988
    %2577 = vmatprep.subr.bf16.mxu0 %v1993
    %2578 = vmatpush1.bf16.msra.mxu0 %v1992
    %2579 = vmatprep.subr.bf16.mxu0 %v1997
    %2580 = vmatpush1.bf16.msra.mxu0 %v1996
    %2581 = vmatprep.subr.bf16.mxu0 %v2001
    %2582 = vmatpush1.bf16.msra.mxu0 %v2000
    %2583 = vmatprep.subr.bf16.mxu0 %v2005
    %2584 = vmatpush1.bf16.msra.mxu0 %v2004
    %2585 = vmatprep.subr.bf16.mxu0 %v2009
    %2586 = vmatpush1.bf16.msra.mxu0 %v2008
    %2587 = vmatprep.subr.bf16.mxu0 %v2013
    %2588 = vmatpush1.bf16.msra.mxu0 %v2012
    %2589 = vmatprep.mubr.bf16.mxu0 %v711
    %2590 = vmatmul.mubr.bf16.gmra.mrb[0].mxu0 %v710
    %v2591 = vpop.f32.mrb[0].mxu0
    %v2592 = vadd.f32 %v2551, %v2591
    %v2593 = vpop.f32.mrb[0].mxu0
    %v2594 = vadd.f32 %v2553, %v2593
    %v2595 = vpop.f32.mrb[0].mxu0
    %v2596 = vpop.f32.mrb[0].mxu0
    %2597 = vdwg.mxu0
    %vm2598 = vcmp.ge.f32.partialorder %v2428, 0.0
    %vm2599 = vcmp.ge.f32.partialorder %v2430, 0.0
    %vm2600 = vcmp.ge.f32.partialorder %v2592, 0.0
    %vm2601 = vcmp.ge.f32.partialorder %v2594, 0.0
    %v2602 = vmul.f32 %v2428, 0.2
    %v2603 = vmul.f32 %v2430, 0.2
    %v2604 = vmul.f32 %v2592, 0.2
    %v2605 = vmul.f32 %v2594, 0.2
    %v2606 = vsel %vm2598, %v2428, %v2602
    %v2607 = vsel %vm2599, %v2430, %v2603
    %v2608 = vsel %vm2600, %v2592, %v2604
    %v2609 = vsel %vm2601, %v2594, %v2605
    %v2610 = vpack.c.bf16 %v2606, %v2606
    %v2611 = vpack.c.bf16 %v2607, %v2607
    %v2612 = vpack.c.bf16 %v2608, %v2608
    %v2613 = vpack.c.bf16 %v2609, %v2609
    %v2614 = vld [vmem:[#allocation8] sm:$0xff]
    %v2615 = vld [vmem:[#allocation8 + $0x8] sm:$0xff]
    %v2616 = vld [vmem:[#allocation8 + $0x10] sm:$0xff]
    %v2617 = vld [vmem:[#allocation8 + $0x18] sm:$0xff]
    %v2618 = vld [vmem:[#allocation8 + $0x20] sm:$0xff]
    %v2619 = vld [vmem:[#allocation8 + $0x28] sm:$0xff]
    %v2620 = vld [vmem:[#allocation8 + $0x30] sm:$0xff]
    %v2621 = vld [vmem:[#allocation8 + $0x38] sm:$0xff]
    %v2622 = vld [vmem:[#allocation8 + $0x40] sm:$0xff]
    %v2623 = vld [vmem:[#allocation8 + $0x48] sm:$0xff]
    %v2624 = vld [vmem:[#allocation8 + $0x50] sm:$0xff]
    %v2625 = vld [vmem:[#allocation8 + $0x58] sm:$0xff]
    %v2626 = vld [vmem:[#allocation8 + $0x60] sm:$0xff]
    %v2627 = vld [vmem:[#allocation8 + $0x68] sm:$0xff]
    %v2628 = vld [vmem:[#allocation8 + $0x70] sm:$0xff]
    %v2629 = vld [vmem:[#allocation8 + $0x78] sm:$0xff]
    %v2630 = vld [vmem:[#allocation8 + $0x80] sm:$0xff]
    %v2631 = vld [vmem:[#allocation8 + $0x88] sm:$0xff]
    %v2632 = vld [vmem:[#allocation8 + $0x90] sm:$0xff]
    %v2633 = vld [vmem:[#allocation8 + $0x98] sm:$0xff]
    %v2634 = vld [vmem:[#allocation8 + $0xa0] sm:$0xff]
    %v2635 = vld [vmem:[#allocation8 + $0xa8] sm:$0xff]
    %v2636 = vld [vmem:[#allocation8 + $0xb0] sm:$0xff]
    %v2637 = vld [vmem:[#allocation8 + $0xb8] sm:$0xff]
    %v2638 = vld [vmem:[#allocation8 + $0xc0] sm:$0xff]
    %v2639 = vld [vmem:[#allocation8 + $0xc8] sm:$0xff]
    %v2640 = vld [vmem:[#allocation8 + $0xd0] sm:$0xff]
    %v2641 = vld [vmem:[#allocation8 + $0xd8] sm:$0xff]
    %v2642 = vld [vmem:[#allocation8 + $0xe0] sm:$0xff]
    %v2643 = vld [vmem:[#allocation8 + $0xe8] sm:$0xff]
    %v2644 = vld [vmem:[#allocation8 + $0xf0] sm:$0xff]
    %v2645 = vld [vmem:[#allocation8 + $0xf8] sm:$0xff]
    %v2646 = vld [vmem:[#allocation8 + $0x100] sm:$0xff]
    %v2647 = vld [vmem:[#allocation8 + $0x108] sm:$0xff]
    %v2648 = vld [vmem:[#allocation8 + $0x110] sm:$0xff]
    %v2649 = vld [vmem:[#allocation8 + $0x118] sm:$0xff]
    %v2650 = vld [vmem:[#allocation8 + $0x120] sm:$0xff]
    %v2651 = vld [vmem:[#allocation8 + $0x128] sm:$0xff]
    %v2652 = vld [vmem:[#allocation8 + $0x130] sm:$0xff]
    %v2653 = vld [vmem:[#allocation8 + $0x138] sm:$0xff]
    %v2654 = vld [vmem:[#allocation8 + $0x140] sm:$0xff]
    %v2655 = vld [vmem:[#allocation8 + $0x148] sm:$0xff]
    %v2656 = vld [vmem:[#allocation8 + $0x150] sm:$0xff]
    %v2657 = vld [vmem:[#allocation8 + $0x158] sm:$0xff]
    %v2658 = vld [vmem:[#allocation8 + $0x160] sm:$0xff]
    %v2659 = vld [vmem:[#allocation8 + $0x168] sm:$0xff]
    %v2660 = vld [vmem:[#allocation8 + $0x170] sm:$0xff]
    %v2661 = vld [vmem:[#allocation8 + $0x178] sm:$0xff]
    %v2662 = vld [vmem:[#allocation8 + $0x180] sm:$0xff]
    %v2663 = vld [vmem:[#allocation8 + $0x188] sm:$0xff]
    %v2664 = vld [vmem:[#allocation8 + $0x190] sm:$0xff]
    %v2665 = vld [vmem:[#allocation8 + $0x198] sm:$0xff]
    %v2666 = vld [vmem:[#allocation8 + $0x1a0] sm:$0xff]
    %v2667 = vld [vmem:[#allocation8 + $0x1a8] sm:$0xff]
    %v2668 = vld [vmem:[#allocation8 + $0x1b0] sm:$0xff]
    %v2669 = vld [vmem:[#allocation8 + $0x1b8] sm:$0xff]
    %v2670 = vld [vmem:[#allocation8 + $0x1c0] sm:$0xff]
    %v2671 = vld [vmem:[#allocation8 + $0x1c8] sm:$0xff]
    %v2672 = vld [vmem:[#allocation8 + $0x1d0] sm:$0xff]
    %v2673 = vld [vmem:[#allocation8 + $0x1d8] sm:$0xff]
    %v2674 = vld [vmem:[#allocation8 + $0x1e0] sm:$0xff]
    %v2675 = vld [vmem:[#allocation8 + $0x1e8] sm:$0xff]
    %v2676 = vld [vmem:[#allocation8 + $0x1f0] sm:$0xff]
    %v2677 = vld [vmem:[#allocation8 + $0x1f8] sm:$0xff]
    %v2678 = vld [vmem:[%s6] sm:$0x3]
    %v2680 = vlaneseq
    %v2681 = vshrl.u32 %v2680, 7
    %v2682 = vsub.s32 0, %v2681
    %v2683 = vrot.slane %v2678, %v2682
    %v2684 = vlaneseq
    %v2685 = vshrl.u32 %v2684, 7
    %v2686 = vsub.s32 1, %v2685
    %v2687 = vrot.slane %v2678, %v2686
    %v2754 = vunpack.c.l.b16 %v2614
    %v2755 = vunpack.c.h.b16 %v2614
    %v2756 = vunpack.c.l.b16 %v2615
    %v2757 = vunpack.c.h.b16 %v2615
    %v2758 = vunpack.c.l.b16 %v2616
    %v2759 = vunpack.c.h.b16 %v2616
    %v2760 = vunpack.c.l.b16 %v2617
    %v2761 = vunpack.c.h.b16 %v2617
    %v2762 = vunpack.c.l.b16 %v2618
    %v2763 = vunpack.c.h.b16 %v2618
    %v2764 = vunpack.c.l.b16 %v2619
    %v2765 = vunpack.c.h.b16 %v2619
    %v2766 = vunpack.c.l.b16 %v2620
    %v2767 = vunpack.c.h.b16 %v2620
    %v2768 = vunpack.c.l.b16 %v2621
    %v2769 = vunpack.c.h.b16 %v2621
    %v2770 = vunpack.c.l.b16 %v2622
    %v2771 = vunpack.c.h.b16 %v2622
    %v2772 = vunpack.c.l.b16 %v2623
    %v2773 = vunpack.c.h.b16 %v2623
    %v2774 = vunpack.c.l.b16 %v2624
    %v2775 = vunpack.c.h.b16 %v2624
    %v2776 = vunpack.c.l.b16 %v2625
    %v2777 = vunpack.c.h.b16 %v2625
    %v2778 = vunpack.c.l.b16 %v2626
    %v2779 = vunpack.c.h.b16 %v2626
    %v2780 = vunpack.c.l.b16 %v2627
    %v2781 = vunpack.c.h.b16 %v2627
    %v2782 = vunpack.c.l.b16 %v2628
    %v2783 = vunpack.c.h.b16 %v2628
    %v2784 = vunpack.c.l.b16 %v2629
    %v2785 = vunpack.c.h.b16 %v2629
    %v2786 = vunpack.c.l.b16 %v2630
    %v2787 = vunpack.c.h.b16 %v2630
    %v2788 = vunpack.c.l.b16 %v2631
    %v2789 = vunpack.c.h.b16 %v2631
    %v2790 = vunpack.c.l.b16 %v2632
    %v2791 = vunpack.c.h.b16 %v2632
    %v2792 = vunpack.c.l.b16 %v2633
    %v2793 = vunpack.c.h.b16 %v2633
    %v2794 = vunpack.c.l.b16 %v2634
    %v2795 = vunpack.c.h.b16 %v2634
    %v2796 = vunpack.c.l.b16 %v2635
    %v2797 = vunpack.c.h.b16 %v2635
    %v2798 = vunpack.c.l.b16 %v2636
    %v2799 = vunpack.c.h.b16 %v2636
    %v2800 = vunpack.c.l.b16 %v2637
    %v2801 = vunpack.c.h.b16 %v2637
    %v2802 = vunpack.c.l.b16 %v2638
    %v2803 = vunpack.c.h.b16 %v2638
    %v2804 = vunpack.c.l.b16 %v2639
    %v2805 = vunpack.c.h.b16 %v2639
    %v2806 = vunpack.c.l.b16 %v2640
    %v2807 = vunpack.c.h.b16 %v2640
    %v2808 = vunpack.c.l.b16 %v2641
    %v2809 = vunpack.c.h.b16 %v2641
    %v2810 = vunpack.c.l.b16 %v2642
    %v2811 = vunpack.c.h.b16 %v2642
    %v2812 = vunpack.c.l.b16 %v2643
    %v2813 = vunpack.c.h.b16 %v2643
    %v2814 = vunpack.c.l.b16 %v2644
    %v2815 = vunpack.c.h.b16 %v2644
    %v2816 = vunpack.c.l.b16 %v2645
    %v2817 = vunpack.c.h.b16 %v2645
    %v2818 = vunpack.c.l.b16 %v2646
    %v2819 = vunpack.c.h.b16 %v2646
    %v2820 = vunpack.c.l.b16 %v2647
    %v2821 = vunpack.c.h.b16 %v2647
    %v2822 = vunpack.c.l.b16 %v2648
    %v2823 = vunpack.c.h.b16 %v2648
    %v2824 = vunpack.c.l.b16 %v2649
    %v2825 = vunpack.c.h.b16 %v2649
    %v2826 = vunpack.c.l.b16 %v2650
    %v2827 = vunpack.c.h.b16 %v2650
    %v2828 = vunpack.c.l.b16 %v2651
    %v2829 = vunpack.c.h.b16 %v2651
    %v2830 = vunpack.c.l.b16 %v2652
    %v2831 = vunpack.c.h.b16 %v2652
    %v2832 = vunpack.c.l.b16 %v2653
    %v2833 = vunpack.c.h.b16 %v2653
    %v2834 = vunpack.c.l.b16 %v2654
    %v2835 = vunpack.c.h.b16 %v2654
    %v2836 = vunpack.c.l.b16 %v2655
    %v2837 = vunpack.c.h.b16 %v2655
    %v2838 = vunpack.c.l.b16 %v2656
    %v2839 = vunpack.c.h.b16 %v2656
    %v2840 = vunpack.c.l.b16 %v2657
    %v2841 = vunpack.c.h.b16 %v2657
    %v2842 = vunpack.c.l.b16 %v2658
    %v2843 = vunpack.c.h.b16 %v2658
    %v2844 = vunpack.c.l.b16 %v2659
    %v2845 = vunpack.c.h.b16 %v2659
    %v2846 = vunpack.c.l.b16 %v2660
    %v2847 = vunpack.c.h.b16 %v2660
    %v2848 = vunpack.c.l.b16 %v2661
    %v2849 = vunpack.c.h.b16 %v2661
    %v2850 = vunpack.c.l.b16 %v2662
    %v2851 = vunpack.c.h.b16 %v2662
    %v2852 = vunpack.c.l.b16 %v2663
    %v2853 = vunpack.c.h.b16 %v2663
    %v2854 = vunpack.c.l.b16 %v2664
    %v2855 = vunpack.c.h.b16 %v2664
    %v2856 = vunpack.c.l.b16 %v2665
    %v2857 = vunpack.c.h.b16 %v2665
    %v2858 = vunpack.c.l.b16 %v2666
    %v2859 = vunpack.c.h.b16 %v2666
    %v2860 = vunpack.c.l.b16 %v2667
    %v2861 = vunpack.c.h.b16 %v2667
    %v2862 = vunpack.c.l.b16 %v2668
    %v2863 = vunpack.c.h.b16 %v2668
    %v2864 = vunpack.c.l.b16 %v2669
    %v2865 = vunpack.c.h.b16 %v2669
    %v2866 = vunpack.c.l.b16 %v2670
    %v2867 = vunpack.c.h.b16 %v2670
    %v2868 = vunpack.c.l.b16 %v2671
    %v2869 = vunpack.c.h.b16 %v2671
    %v2870 = vunpack.c.l.b16 %v2672
    %v2871 = vunpack.c.h.b16 %v2672
    %v2872 = vunpack.c.l.b16 %v2673
    %v2873 = vunpack.c.h.b16 %v2673
    %v2874 = vunpack.c.l.b16 %v2674
    %v2875 = vunpack.c.h.b16 %v2674
    %v2876 = vunpack.c.l.b16 %v2675
    %v2877 = vunpack.c.h.b16 %v2675
    %v2878 = vunpack.c.l.b16 %v2676
    %v2879 = vunpack.c.h.b16 %v2676
    %v2880 = vunpack.c.l.b16 %v2677
    %v2881 = vunpack.c.h.b16 %v2677
    %v2882 = vpack.c.b16 %v2756, %v2754
    %v2883 = vpack.c.b16 %v2757, %v2755
    %v2884 = vpack.c.b16 %v2760, %v2758
    %v2885 = vpack.c.b16 %v2761, %v2759
    %v2886 = vpack.c.b16 %v2764, %v2762
    %v2887 = vpack.c.b16 %v2765, %v2763
    %v2888 = vpack.c.b16 %v2768, %v2766
    %v2889 = vpack.c.b16 %v2769, %v2767
    %v2890 = vpack.c.b16 %v2772, %v2770
    %v2891 = vpack.c.b16 %v2773, %v2771
    %v2892 = vpack.c.b16 %v2776, %v2774
    %v2893 = vpack.c.b16 %v2777, %v2775
    %v2894 = vpack.c.b16 %v2780, %v2778
    %v2895 = vpack.c.b16 %v2781, %v2779
    %v2896 = vpack.c.b16 %v2784, %v2782
    %v2897 = vpack.c.b16 %v2785, %v2783
    %v2898 = vpack.c.b16 %v2788, %v2786
    %v2899 = vpack.c.b16 %v2789, %v2787
    %v2900 = vpack.c.b16 %v2792, %v2790
    %v2901 = vpack.c.b16 %v2793, %v2791
    %v2902 = vpack.c.b16 %v2796, %v2794
    %v2903 = vpack.c.b16 %v2797, %v2795
    %v2904 = vpack.c.b16 %v2800, %v2798
    %v2905 = vpack.c.b16 %v2801, %v2799
    %v2906 = vpack.c.b16 %v2804, %v2802
    %v2907 = vpack.c.b16 %v2805, %v2803
    %v2908 = vpack.c.b16 %v2808, %v2806
    %v2909 = vpack.c.b16 %v2809, %v2807
    %v2910 = vpack.c.b16 %v2812, %v2810
    %v2911 = vpack.c.b16 %v2813, %v2811
    %v2912 = vpack.c.b16 %v2816, %v2814
    %v2913 = vpack.c.b16 %v2817, %v2815
    %v2914 = vpack.c.b16 %v2820, %v2818
    %v2915 = vpack.c.b16 %v2821, %v2819
    %v2916 = vpack.c.b16 %v2824, %v2822
    %v2917 = vpack.c.b16 %v2825, %v2823
    %v2918 = vpack.c.b16 %v2828, %v2826
    %v2919 = vpack.c.b16 %v2829, %v2827
    %v2920 = vpack.c.b16 %v2832, %v2830
    %v2921 = vpack.c.b16 %v2833, %v2831
    %v2922 = vpack.c.b16 %v2836, %v2834
    %v2923 = vpack.c.b16 %v2837, %v2835
    %v2924 = vpack.c.b16 %v2840, %v2838
    %v2925 = vpack.c.b16 %v2841, %v2839
    %v2926 = vpack.c.b16 %v2844, %v2842
    %v2927 = vpack.c.b16 %v2845, %v2843
    %v2928 = vpack.c.b16 %v2848, %v2846
    %v2929 = vpack.c.b16 %v2849, %v2847
    %v2930 = vpack.c.b16 %v2852, %v2850
    %v2931 = vpack.c.b16 %v2853, %v2851
    %v2932 = vpack.c.b16 %v2856, %v2854
    %v2933 = vpack.c.b16 %v2857, %v2855
    %v2934 = vpack.c.b16 %v2860, %v2858
    %v2935 = vpack.c.b16 %v2861, %v2859
    %v2936 = vpack.c.b16 %v2864, %v2862
    %v2937 = vpack.c.b16 %v2865, %v2863
    %v2938 = vpack.c.b16 %v2868, %v2866
    %v2939 = vpack.c.b16 %v2869, %v2867
    %v2940 = vpack.c.b16 %v2872, %v2870
    %v2941 = vpack.c.b16 %v2873, %v2871
    %v2942 = vpack.c.b16 %v2876, %v2874
    %v2943 = vpack.c.b16 %v2877, %v2875
    %v2944 = vpack.c.b16 %v2880, %v2878
    %v2945 = vpack.c.b16 %v2881, %v2879
    %3010 = vmatprep.subr.bf16.mxu0 %v2883
    %3011 = vmatpush1.bf16.msra.mxu0 %v2882
    %3012 = vmatprep.subr.bf16.mxu0 %v2885
    %3013 = vmatpush1.bf16.msra.mxu0 %v2884
    %3014 = vmatprep.subr.bf16.mxu0 %v2887
    %3015 = vmatpush1.bf16.msra.mxu0 %v2886
    %3016 = vmatprep.subr.bf16.mxu0 %v2889
    %3017 = vmatpush1.bf16.msra.mxu0 %v2888
    %3018 = vmatprep.subr.bf16.mxu0 %v2891
    %3019 = vmatpush1.bf16.msra.mxu0 %v2890
    %3020 = vmatprep.subr.bf16.mxu0 %v2893
    %3021 = vmatpush1.bf16.msra.mxu0 %v2892
    %3022 = vmatprep.subr.bf16.mxu0 %v2895
    %3023 = vmatpush1.bf16.msra.mxu0 %v2894
    %3024 = vmatprep.subr.bf16.mxu0 %v2897
    %3025 = vmatpush1.bf16.msra.mxu0 %v2896
    %3026 = vmatprep.subr.bf16.mxu0 %v2899
    %3027 = vmatpush1.bf16.msra.mxu0 %v2898
    %3028 = vmatprep.subr.bf16.mxu0 %v2901
    %3029 = vmatpush1.bf16.msra.mxu0 %v2900
    %3030 = vmatprep.subr.bf16.mxu0 %v2903
    %3031 = vmatpush1.bf16.msra.mxu0 %v2902
    %3032 = vmatprep.subr.bf16.mxu0 %v2905
    %3033 = vmatpush1.bf16.msra.mxu0 %v2904
    %3034 = vmatprep.subr.bf16.mxu0 %v2907
    %3035 = vmatpush1.bf16.msra.mxu0 %v2906
    %3036 = vmatprep.subr.bf16.mxu0 %v2909
    %3037 = vmatpush1.bf16.msra.mxu0 %v2908
    %3038 = vmatprep.subr.bf16.mxu0 %v2911
    %3039 = vmatpush1.bf16.msra.mxu0 %v2910
    %3040 = vmatprep.subr.bf16.mxu0 %v2913
    %3041 = vmatpush1.bf16.msra.mxu0 %v2912
    %3042 = vmatprep.mubr.bf16.mxu0 %v2611
    %3043 = vmatmul.mubr.bf16.gmra.mrb[0].mxu0 %v2610
    %v3044 = vpop.f32.mrb[0].mxu0
    %v3045 = vadd.f32 %v2683, %v3044
    %v3046 = vpop.f32.mrb[0].mxu0
    %v3047 = vadd.f32 %v2687, %v3046
    %v3048 = vpop.f32.mrb[0].mxu0
    %v3049 = vpop.f32.mrb[0].mxu0
    %3050 = vdwg.mxu0
    %3051 = vmatprep.subr.bf16.mxu0 %v2915
    %3052 = vmatpush1.bf16.msra.mxu0 %v2914
    %3053 = vmatprep.subr.bf16.mxu0 %v2917
    %3054 = vmatpush1.bf16.msra.mxu0 %v2916
    %3055 = vmatprep.subr.bf16.mxu0 %v2919
    %3056 = vmatpush1.bf16.msra.mxu0 %v2918
    %3057 = vmatprep.subr.bf16.mxu0 %v2921
    %3058 = vmatpush1.bf16.msra.mxu0 %v2920
    %3059 = vmatprep.subr.bf16.mxu0 %v2923
    %3060 = vmatpush1.bf16.msra.mxu0 %v2922
    %3061 = vmatprep.subr.bf16.mxu0 %v2925
    %3062 = vmatpush1.bf16.msra.mxu0 %v2924
    %3063 = vmatprep.subr.bf16.mxu0 %v2927
    %3064 = vmatpush1.bf16.msra.mxu0 %v2926
    %3065 = vmatprep.subr.bf16.mxu0 %v2929
    %3066 = vmatpush1.bf16.msra.mxu0 %v2928
    %3067 = vmatprep.subr.bf16.mxu0 %v2931
    %3068 = vmatpush1.bf16.msra.mxu0 %v2930
    %3069 = vmatprep.subr.bf16.mxu0 %v2933
    %3070 = vmatpush1.bf16.msra.mxu0 %v2932
    %3071 = vmatprep.subr.bf16.mxu0 %v2935
    %3072 = vmatpush1.bf16.msra.mxu0 %v2934
    %3073 = vmatprep.subr.bf16.mxu0 %v2937
    %3074 = vmatpush1.bf16.msra.mxu0 %v2936
    %3075 = vmatprep.subr.bf16.mxu0 %v2939
    %3076 = vmatpush1.bf16.msra.mxu0 %v2938
    %3077 = vmatprep.subr.bf16.mxu0 %v2941
    %3078 = vmatpush1.bf16.msra.mxu0 %v2940
    %3079 = vmatprep.subr.bf16.mxu0 %v2943
    %3080 = vmatpush1.bf16.msra.mxu0 %v2942
    %3081 = vmatprep.subr.bf16.mxu0 %v2945
    %3082 = vmatpush1.bf16.msra.mxu0 %v2944
    %3083 = vmatprep.mubr.bf16.mxu0 %v2613
    %3084 = vmatmul.mubr.bf16.gmra.mrb[0].mxu0 %v2612
    %v3085 = vpop.f32.mrb[0].mxu0
    %v3086 = vadd.f32 %v3045, %v3085
    %v3087 = vpop.f32.mrb[0].mxu0
    %v3088 = vadd.f32 %v3047, %v3087
    %v3089 = vpop.f32.mrb[0].mxu0
    %v3090 = vpop.f32.mrb[0].mxu0
    %3091 = vdwg.mxu0
    %vm3092 = vcmp.ge.f32.partialorder %v3086, 0.0
    %vm3093 = vcmp.ge.f32.partialorder %v3088, 0.0
    %v3094 = vmul.f32 %v3086, 0.2
    %v3095 = vmul.f32 %v3088, 0.2
    %v3096 = vsel %vm3092, %v3086, %v3094
    %v3097 = vsel %vm3093, %v3088, %v3095
    %v3098 = vld [vmem:[%s7] sm:$0x3]
    %v3100 = vlaneseq
    %v3101 = vshrl.u32 %v3100, 7
    %v3102 = vsub.s32 0, %v3101
    %v3103 = vrot.slane %v3098, %v3102
    %v3104 = vlaneseq
    %v3105 = vshrl.u32 %v3104, 7
    %v3106 = vsub.s32 1, %v3105
    %v3107 = vrot.slane %v3098, %v3106
    %v3110 = vmul.f32 %v3096, %v3103
    %v3111 = vmul.f32 %v3097, %v3107
    %v3112 = vadd.f32 %v3110, %v3111
    %3113 = vadd.xlane.f32.xlu0 %v3112
    %v3114 = vpop.xlane.xlu0 %3113
    %v3115 = vld [vmem:[#allocation2] sm:$0x1]
    %v3117 = vlaneseq
    %v3118 = vshrl.u32 %v3117, 7
    %v3119 = vsub.s32 0, %v3118
    %v3120 = vrot.slane %v3115, %v3119
    %v3122 = vadd.f32 %v3114, %v3120
    %v3123 = vxor.u32 %v3122, 2147483648
    %v3124 = vmul.f32 %v3123, 1.442695
    %v3125 = vpow.pop %v3124
    %v3126 = vadd.f32 %v3125, 1.0
    %v3127 = vrcp.pop %v3126
    %v3128 = vmul.f32 1.0, %v3127
    %vm3129 = vcmask 7168
    %3130 = vst.msk [vmem:[%s9] sm:$0xff] %vm3129, %v3128
    // Predicated region
    $region54: #{tpu_custom_call.1} parent=1 // pred_check
      _
    $region55: #{tpu_custom_call.1} parent=1 // pred_check_branch
      %3132 = sbr.rel (0) target = $region57
    $region56: #{tpu_custom_call.1} parent=1 // pred_region
      _
    $region57: #{tpu_custom_call.1} parent=1 // pred_fallthru
      _
    // Predicated region
    $region58: #{tpu_custom_call.1} parent=1 // pred_check
      _
    $region59: #{tpu_custom_call.1} parent=1 // pred_check_branch
      %3134 = sbr.rel (0) target = $region61
    $region60: #{tpu_custom_call.1} parent=1 // pred_region
      _
    $region61: #{tpu_custom_call.1} parent=1 // pred_fallthru
      _
    %3135 = vsyncpa [#allocation4], 1
    %3136 = vsyncpa [#allocation6], 1
    %3137 = vsyncpa [#allocation9], 1

</llo_original>
